<compile_context>
chip_gen: v5e
topology: v5e:2x2
jax: 0.10.0
libtpu: 0.0.40
codegen_flags: <defaults>
</compile_context>

<pallas_src>
import functools

import jax
import jax.numpy as jnp
from jax.experimental import pallas as pl
from jax.experimental.pallas import tpu as pltpu


_VMEM_LIMIT = 48 * 1024 * 1024


def _round_up(x, m):
    return ((x + m - 1) // m) * m


def _pick_row_tile(rows, target=512):
    # Multiple of 8 (sublane), capped at `target`; bigger tiles amortize the
    # ~0.35us per-grid-step overhead on these thin, mem-bound matmuls.
    return min(target, _round_up(rows, 8))


# ----------------------------- Pallas kernels -------------------------------

def _down_matmul_kernel(p_ref, w_ref, b_ref, o_ref):
    """patches @ W + b with the up-path ReLU fused into the epilogue.

    patches/W are bf16, accumulation in f32 on the MXU, output stored bf16
    (it only feeds the up-path bf16 matmul).
    """
    y = jnp.dot(p_ref[...], w_ref[...], preferred_element_type=jnp.float32)
    y = y + b_ref[...]
    o_ref[...] = jnp.maximum(y, 0.0).astype(o_ref.dtype)


def down_conv_relu(patches, w, b, *, row_tile):
    Rp, K = patches.shape
    OC = w.shape[1]
    return pl.pallas_call(
        _down_matmul_kernel,
        out_shape=jax.ShapeDtypeStruct((Rp, OC), jnp.bfloat16),
        grid=(Rp // row_tile,),
        in_specs=[
            pl.BlockSpec((row_tile, K), lambda i: (i, 0)),
            pl.BlockSpec((K, OC), lambda i: (0, 0)),
            pl.BlockSpec((1, OC), lambda i: (0, 0)),
        ],
        out_specs=pl.BlockSpec((row_tile, OC), lambda i: (i, 0)),
        compiler_params=pltpu.CompilerParams(
            dimension_semantics=("parallel",),
            vmem_limit_bytes=_VMEM_LIMIT,
        ),
    )(patches, w, b.reshape(1, OC))


def _up_phase_kernel(p_ref, w_ref, b_ref, o_ref, sum_ref, sq_ref, *,
                     rows_valid, row_tile):
    """One ConvT output phase tile: matmul + bias, plus fused BN statistics.

    Grid = (phase, row_tile).  sum_ref / sq_ref have a constant block index so
    they stay resident in VMEM across the whole grid (accumulator pattern);
    both grid axes are therefore marked 'arbitrary'.
    Rows past `rows_valid` (zero-padded last tile) are masked out of the stats.
    """
    p = pl.program_id(0)
    r = pl.program_id(1)

    @pl.when(jnp.logical_and(p == 0, r == 0))
    def _():
        sum_ref[...] = jnp.zeros_like(sum_ref)
        sq_ref[...] = jnp.zeros_like(sq_ref)

    y = jnp.dot(p_ref[0], w_ref[0], preferred_element_type=jnp.float32)
    y = y + b_ref[...]                                   # (row_tile, OC) f32
    o_ref[0, :, :] = y

    ridx = jax.lax.broadcasted_iota(jnp.int32, (row_tile, 1), 0) + r * row_tile
    ym = jnp.where(ridx < rows_valid, y, 0.0)
    sum_ref[...] += jnp.sum(ym, axis=0, keepdims=True)
    sq_ref[...] += jnp.sum(ym * ym, axis=0, keepdims=True)


def up_conv_bn_stats(p_up, w_up, b, *, rows_valid, row_tile):
    P, Rp, K = p_up.shape
    OC = w_up.shape[2]
    kernel = functools.partial(_up_phase_kernel,
                               rows_valid=rows_valid, row_tile=row_tile)
    return pl.pallas_call(
        kernel,
        out_shape=(
            jax.ShapeDtypeStruct((P, Rp, OC), jnp.float32),   # pre-BN ConvT output
            jax.ShapeDtypeStruct((1, OC), jnp.float32),       # per-channel sum
            jax.ShapeDtypeStruct((1, OC), jnp.float32),       # per-channel sum of squares
        ),
        grid=(P, Rp // row_tile),
        in_specs=[
            pl.BlockSpec((1, row_tile, K), lambda p, r: (p, r, 0)),
            pl.BlockSpec((1, K, OC), lambda p, r: (p, 0, 0)),
            pl.BlockSpec((1, OC), lambda p, r: (0, 0)),
        ],
        out_specs=(
            pl.BlockSpec((1, row_tile, OC), lambda p, r: (p, r, 0)),
            pl.BlockSpec((1, OC), lambda p, r: (0, 0)),
            pl.BlockSpec((1, OC), lambda p, r: (0, 0)),
        ),
        compiler_params=pltpu.CompilerParams(
            # Both axes carry the resident BN-stat accumulators -> 'arbitrary'.
            dimension_semantics=("arbitrary", "arbitrary"),
            vmem_limit_bytes=_VMEM_LIMIT,
        ),
    )(p_up, w_up, b.reshape(1, OC))


def _scale_shift_kernel(x_ref, sc_ref, sh_ref, o_ref):
    o_ref[...] = x_ref[...] * sc_ref[...] + sh_ref[...]


def bn_apply(x3, scale, shift, *, row_tile):
    """Tiled y = x*scale + shift (the BatchNorm normalize pass)."""
    P, Rp, OC = x3.shape
    return pl.pallas_call(
        _scale_shift_kernel,
        out_shape=jax.ShapeDtypeStruct((P, Rp, OC), jnp.float32),
        grid=(P, Rp // row_tile),
        in_specs=[
            pl.BlockSpec((1, row_tile, OC), lambda p, r: (p, r, 0)),
            pl.BlockSpec((1, 1, OC), lambda p, r: (0, 0, 0)),
            pl.BlockSpec((1, 1, OC), lambda p, r: (0, 0, 0)),
        ],
        out_specs=pl.BlockSpec((1, row_tile, OC), lambda p, r: (p, r, 0)),
        compiler_params=pltpu.CompilerParams(
            dimension_semantics=("parallel", "parallel"),
            vmem_limit_bytes=_VMEM_LIMIT,
        ),
    )(x3, scale.reshape(1, 1, OC), shift.reshape(1, 1, OC))


# ------------------------------- glue (JAX) ---------------------------------

def _im2col(xp, k, stride, oh, ow):
    """xp: (N, C, Hp, Wp) -> (N*oh*ow, C*k*k); column order is (C, kh, kw)."""
    N, C = xp.shape[0], xp.shape[1]
    idx_h = jnp.arange(oh)[:, None] * stride + jnp.arange(k)[None, :]
    idx_w = jnp.arange(ow)[:, None] * stride + jnp.arange(k)[None, :]
    cols = xp[:, :, idx_h, :]
    cols = cols[:, :, :, :, idx_w]
    cols = cols.transpose(0, 2, 4, 1, 3, 5)
    return cols.reshape(N * oh * ow, C * k * k)


def init_params(key, input_nc, inner_nc, outer_nc):
    k1, k2 = jax.random.split(key)
    return {
        # Conv2d(input_nc, inner_nc, 4, stride=2, padding=1)
        "down_w": 0.02 * jax.random.normal(k1, (inner_nc, input_nc, 4, 4), jnp.float32),
        "down_b": jnp.zeros((inner_nc,), jnp.float32),
        # ConvTranspose2d(inner_nc, outer_nc, 4, stride=2, padding=1)
        # (PyTorch ConvTranspose2d weight layout: (in_ch, out_ch, kh, kw))
        "up_w": 0.02 * jax.random.normal(k2, (inner_nc, outer_nc, 4, 4), jnp.float32),
        "up_b": jnp.zeros((outer_nc,), jnp.float32),
        # BatchNorm2d(outer_nc) default affine init
        "bn_gamma": jnp.ones((outer_nc,), jnp.float32),
        "bn_beta": jnp.zeros((outer_nc,), jnp.float32),
    }


def forward(x, params, *, eps=1e-5):
    """Innermost ResPatchSoftUnetSkipConnectionShiftTriple forward. x: NCHW f32."""
    N, Cin, H, W = x.shape
    Wd, bd = params["down_w"], params["down_b"]
    Wt, bt = params["up_w"], params["up_b"]
    inner_nc = Wd.shape[0]
    outer_nc = Wt.shape[1]
    oh, ow = H // 2, W // 2
    R = N * oh * ow

    # --- down = [LeakyReLU(0.2), Conv2d(k4 s2 p1)] ------------------------------
    # LeakyReLU applied once on x (exact: leaky(0)==0 on the zero padding), not
    # on the 16x-duplicated patch rows.
    xa = jnp.where(x > 0, x, 0.2 * x)
    xp = jnp.pad(xa, ((0, 0), (0, 0), (1, 1), (1, 1)))
    p_down = _im2col(xp, 4, 2, oh, ow).astype(jnp.bfloat16)      # (R, Cin*16)
    rt = _pick_row_tile(R)
    Rpad = _round_up(R, rt)
    if Rpad != R:
        p_down = jnp.pad(p_down, ((0, Rpad - R), (0, 0)))
    wd = Wd.reshape(inner_nc, Cin * 16).T.astype(jnp.bfloat16)   # (Cin*16, inner_nc)
    # The up-path ReLU is fused into this kernel's epilogue.
    mid_flat = down_conv_relu(p_down, wd, bd, row_tile=rt)       # (Rpad, inner_nc) bf16
    mid = mid_flat[:R].reshape(N, oh, ow, inner_nc)              # NHWC, already ReLU'd

    # --- up = [ReLU (already applied), ConvTranspose2d(k4 s2 p1), BatchNorm2d] --
    # Phase-decomposed ConvT: output phase (py,px) = out[:, 2m+py, 2l+px, :] is a
    # matmul over a 2x2 neighborhood of `mid` with 4 of the 16 kernel taps
    # (K = 4*inner_nc).  No zero-dilated tensor is ever materialized.
    mp = jnp.pad(mid, ((0, 0), (1, 1), (1, 1), (0, 0)))          # (N, oh+2, ow+2, C)
    phase_patches, phase_weights = [], []
    for py in (0, 1):
        for px in (0, 1):
            taps = [mp[:, py + dh:py + dh + oh, px + dw:px + dw + ow, :]
                    for dh in (0, 1) for dw in (0, 1)]
            pp = jnp.stack(taps, axis=3).reshape(R, 4 * inner_nc)    # (R, 4C) bf16
            phase_patches.append(pp)
            # tap (dh,dw) of phase (py,px) uses kernel element (3-py-2dh, 3-px-2dw)
            wtaps = [Wt[:, :, 3 - py - 2 * dh, 3 - px - 2 * dw]
                     for dh in (0, 1) for dw in (0, 1)]              # each (C, OC)
            phase_weights.append(jnp.stack(wtaps, axis=0).reshape(4 * inner_nc, outer_nc))
    p_up = jnp.stack(phase_patches, axis=0)                          # (4, R, 4C) bf16
    if Rpad != R:
        p_up = jnp.pad(p_up, ((0, 0), (0, Rpad - R), (0, 0)))
    w_up = jnp.stack(phase_weights, axis=0).astype(jnp.bfloat16)     # (4, 4C, OC)

    up_ph, ssum, ssq = up_conv_bn_stats(p_up, w_up, bt, rows_valid=R, row_tile=rt)

    # BatchNorm2d (training mode, biased batch variance) from the fused sums.
    count = jnp.float32(4 * R)                                       # == N*H*W pixels
    mean = ssum[0] / count
    var = ssq[0] / count - mean * mean
    scale = params["bn_gamma"] * jax.lax.rsqrt(var + eps)
    shift = params["bn_beta"] - mean * scale
    x_latter_ph = bn_apply(up_ph, scale, shift, row_tile=rt)         # (4, Rpad, OC)

    # Interleave the 4 ConvT phases back to (N, H, W, OC); go NCHW once at the end.
    xl = x_latter_ph[:, :R, :].reshape(2, 2, N, oh, ow, outer_nc)    # (py, px, n, m, l, c)
    xl = xl.transpose(2, 3, 0, 4, 1, 5).reshape(N, H, W, outer_nc)
    x_latter = xl.transpose(0, 3, 1, 2)

    # spatial sizes match (stride-2 down, stride-2 up) -> no bilinear resize branch.
    return jnp.concatenate([x_latter, x], axis=1)                    # cat([x_latter, x], 1)


# ----------------------------- reference (sanity) ---------------------------

def forward_ref(x, params):
    Wd, bd = params["down_w"], params["down_b"]
    Wt, bt = params["up_w"], params["up_b"]
    a = jnp.where(x > 0, x, 0.2 * x)
    mid = jax.lax.conv_general_dilated(
        a, Wd, (2, 2), ((1, 1), (1, 1)),
        dimension_numbers=("NCHW", "OIHW", "NCHW")) + bd[None, :, None, None]
    r = jnp.maximum(mid, 0.0)
    w_up = jnp.flip(Wt.transpose(1, 0, 2, 3), axis=(2, 3))
    up = jax.lax.conv_general_dilated(
        r, w_up, (1, 1), ((2, 2), (2, 2)), lhs_dilation=(2, 2),
        dimension_numbers=("NCHW", "OIHW", "NCHW")) + bt[None, :, None, None]
    mean = up.mean(axis=(0, 2, 3), keepdims=True)
    var = ((up - mean) ** 2).mean(axis=(0, 2, 3), keepdims=True)
    xl = ((up - mean) / jnp.sqrt(var + 1e-5)
          * params["bn_gamma"][None, :, None, None]
          + params["bn_beta"][None, :, None, None])
    return jnp.concatenate([xl, x], axis=1)


# ----------------------------------- main ------------------------------------

if __name__ == "__main__":
    key = jax.random.PRNGKey(0)
    kx, kp = jax.random.split(key)

    N, input_nc, H, W = 2, 4, 16, 16
    inner_nc, outer_nc = 8, 4

    x = jax.random.normal(kx, (N, input_nc, H, W), jnp.float32)
    params = init_params(kp, input_nc, inner_nc, outer_nc)

    out = jax.block_until_ready(jax.jit(forward)(x, params))

    assert out.shape == (N, outer_nc + input_nc, H, W), out.shape
    assert bool(jnp.all(jnp.isfinite(out)))
    ref = jax.block_until_ready(forward_ref(x, params))
    # bf16 matmul operands (f32 accumulation) -> slightly relaxed tolerance.
    max_err = float(jnp.max(jnp.abs(out - ref)))
    assert jnp.allclose(out, ref, atol=5e-2, rtol=5e-2), max_err

    print("KERNEL_OK")
</pallas_src>

<mosaic_0001>
module attributes {stable_mosaic.version = 11 : i64} {
  func.func @_down_matmul_kernel(%arg0: i32, %arg1: memref<128x64xbf16, #tpu.memory_space<vmem>>, %arg2: memref<64x8xbf16, #tpu.memory_space<vmem>>, %arg3: memref<1x8xf32, #tpu.memory_space<vmem>>, %arg4: memref<128x8xbf16, #tpu.memory_space<vmem>>) attributes {dimension_semantics = [#tpu.dimension_semantics<parallel>], iteration_bounds = array<i64: 1>, scalar_prefetch = 0 : i64, scratch_operands = 0 : i64, tpu.core_type = #tpu.core_type<tc>, window_params = [{transform_indices = @transform_0, window_bounds = array<i64: 128, 64>}, {pipeline_mode = #tpu.pipeline_mode<synchronous>, transform_indices = @transform_1, window_bounds = array<i64: 64, 8>}, {pipeline_mode = #tpu.pipeline_mode<synchronous>, transform_indices = @transform_2, window_bounds = array<i64: 1, 8>}, {transform_indices = @transform_3, window_bounds = array<i64: 128, 8>}]} {
    %c0 = arith.constant 0 : index
    %c0_0 = arith.constant 0 : index
    %0 = vector.load %arg1[%c0, %c0_0] : memref<128x64xbf16, #tpu.memory_space<vmem>>, vector<128x64xbf16>
    %c0_1 = arith.constant 0 : index
    %c0_2 = arith.constant 0 : index
    %1 = vector.load %arg2[%c0_1, %c0_2] : memref<64x8xbf16, #tpu.memory_space<vmem>>, vector<64x8xbf16>
    %cst = arith.constant dense<0.000000e+00> : vector<128x8xf32>
    %2 = tpu.matmul %0, %1, %cst {dimension_numbers = #tpu.dot_dimension_numbers<[1], [0], [0], [1], [0, 0, 1, 1], [], []>} : vector<128x64xbf16>, vector<64x8xbf16>, vector<128x8xf32> -> vector<128x8xf32>
    %c0_3 = arith.constant 0 : index
    %c0_4 = arith.constant 0 : index
    %3 = vector.load %arg3[%c0_3, %c0_4] : memref<1x8xf32, #tpu.memory_space<vmem>>, vector<1x8xf32>
    %4 = vector.broadcast %3 : vector<1x8xf32> to vector<128x8xf32>
    %5 = arith.addf %2, %4 : vector<128x8xf32>
    %cst_5 = arith.constant 0.000000e+00 : f32
    %6 = vector.broadcast %cst_5 : f32 to vector<128x8xf32>
    %7 = arith.maximumf %5, %6 : vector<128x8xf32>
    %8 = arith.truncf %7 : vector<128x8xf32> to vector<128x8xbf16>
    %c0_6 = arith.constant 0 : index
    %c0_7 = arith.constant 0 : index
    %9 = vector.load %arg4[%c0_6, %c0_7] : memref<128x8xbf16, #tpu.memory_space<vmem>>, vector<128x8xbf16>
    tpu.vector_store %arg4[%c0_6, %c0_7], %8 {strides = array<i32>} : memref<128x8xbf16, #tpu.memory_space<vmem>>, vector<128x8xbf16>,
    return
  }
  func.func @transform_0(%arg0: i32) -> (i32, i32) {
    %c0_i32 = arith.constant 0 : i32
    %c0_i32_0 = arith.constant 0 : i32
    return %arg0, %c0_i32 : i32, i32
  }
  func.func @transform_1(%arg0: i32) -> (i32, i32) {
    %c0_i32 = arith.constant 0 : i32
    %c0_i32_0 = arith.constant 0 : i32
    %c0_i32_1 = arith.constant 0 : i32
    return %c0_i32, %c0_i32_0 : i32, i32
  }
  func.func @transform_2(%arg0: i32) -> (i32, i32) {
    %c0_i32 = arith.constant 0 : i32
    %c0_i32_0 = arith.constant 0 : i32
    %c0_i32_1 = arith.constant 0 : i32
    return %c0_i32, %c0_i32_0 : i32, i32
  }
  func.func @transform_3(%arg0: i32) -> (i32, i32) {
    %c0_i32 = arith.constant 0 : i32
    %c0_i32_0 = arith.constant 0 : i32
    return %arg0, %c0_i32 : i32, i32
  }
}

module attributes {stable_mosaic.version = 11 : i64} {
  func.func @_scale_shift_kernel(%arg0: i32, %arg1: i32, %arg2: memref<1x128x4xf32, #tpu.memory_space<vmem>>, %arg3: memref<1x1x4xf32, #tpu.memory_space<vmem>>, %arg4: memref<1x1x4xf32, #tpu.memory_space<vmem>>, %arg5: memref<1x128x4xf32, #tpu.memory_space<vmem>>) attributes {dimension_semantics = [#tpu.dimension_semantics<parallel>, #tpu.dimension_semantics<parallel>], iteration_bounds = array<i64: 4, 1>, scalar_prefetch = 0 : i64, scratch_operands = 0 : i64, tpu.core_type = #tpu.core_type<tc>, window_params = [{transform_indices = @transform_0, window_bounds = array<i64: 1, 128, 4>}, {pipeline_mode = #tpu.pipeline_mode<synchronous>, transform_indices = @transform_1, window_bounds = array<i64: 1, 1, 4>}, {pipeline_mode = #tpu.pipeline_mode<synchronous>, transform_indices = @transform_2, window_bounds = array<i64: 1, 1, 4>}, {transform_indices = @transform_3, window_bounds = array<i64: 1, 128, 4>}]} {
    %c0 = arith.constant 0 : index
    %c0_0 = arith.constant 0 : index
    %c0_1 = arith.constant 0 : index
    %0 = vector.load %arg2[%c0, %c0_0, %c0_1] : memref<1x128x4xf32, #tpu.memory_space<vmem>>, vector<1x128x4xf32>
    %c0_2 = arith.constant 0 : index
    %c0_3 = arith.constant 0 : index
    %c0_4 = arith.constant 0 : index
    %1 = vector.load %arg3[%c0_2, %c0_3, %c0_4] : memref<1x1x4xf32, #tpu.memory_space<vmem>>, vector<1x1x4xf32>
    %2 = vector.broadcast %1 : vector<1x1x4xf32> to vector<1x128x4xf32>
    %3 = arith.mulf %0, %2 : vector<1x128x4xf32>
    %c0_5 = arith.constant 0 : index
    %c0_6 = arith.constant 0 : index
    %c0_7 = arith.constant 0 : index
    %4 = vector.load %arg4[%c0_5, %c0_6, %c0_7] : memref<1x1x4xf32, #tpu.memory_space<vmem>>, vector<1x1x4xf32>
    %5 = vector.broadcast %4 : vector<1x1x4xf32> to vector<1x128x4xf32>
    %6 = arith.addf %3, %5 : vector<1x128x4xf32>
    %c0_8 = arith.constant 0 : index
    %c0_9 = arith.constant 0 : index
    %c0_10 = arith.constant 0 : index
    %7 = vector.load %arg5[%c0_8, %c0_9, %c0_10] : memref<1x128x4xf32, #tpu.memory_space<vmem>>, vector<1x128x4xf32>
    tpu.vector_store %arg5[%c0_8, %c0_9, %c0_10], %6 {strides = array<i32>} : memref<1x128x4xf32, #tpu.memory_space<vmem>>, vector<1x128x4xf32>,
    return
  }
  func.func @transform_0(%arg0: i32, %arg1: i32) -> (i32, i32, i32) {
    %c0_i32 = arith.constant 0 : i32
    %c0_i32_0 = arith.constant 0 : i32
    return %arg0, %arg1, %c0_i32 : i32, i32, i32
  }
  func.func @transform_1(%arg0: i32, %arg1: i32) -> (i32, i32, i32) {
    %c0_i32 = arith.constant 0 : i32
    %c0_i32_0 = arith.constant 0 : i32
    %c0_i32_1 = arith.constant 0 : i32
    %c0_i32_2 = arith.constant 0 : i32
    return %c0_i32, %c0_i32_0, %c0_i32_1 : i32, i32, i32
  }
  func.func @transform_2(%arg0: i32, %arg1: i32) -> (i32, i32, i32) {
    %c0_i32 = arith.constant 0 : i32
    %c0_i32_0 = arith.constant 0 : i32
    %c0_i32_1 = arith.constant 0 : i32
    %c0_i32_2 = arith.constant 0 : i32
    return %c0_i32, %c0_i32_0, %c0_i32_1 : i32, i32, i32
  }
  func.func @transform_3(%arg0: i32, %arg1: i32) -> (i32, i32, i32) {
    %c0_i32 = arith.constant 0 : i32
    %c0_i32_0 = arith.constant 0 : i32
    return %arg0, %arg1, %c0_i32 : i32, i32, i32
  }
}

module attributes {stable_mosaic.version = 11 : i64} {
  func.func @_up_phase_kernel(%arg0: i32, %arg1: i32, %arg2: memref<1x128x32xbf16, #tpu.memory_space<vmem>>, %arg3: memref<1x32x4xbf16, #tpu.memory_space<vmem>>, %arg4: memref<1x4xf32, #tpu.memory_space<vmem>>, %arg5: memref<1x128x4xf32, #tpu.memory_space<vmem>>, %arg6: memref<1x4xf32, #tpu.memory_space<vmem>>, %arg7: memref<1x4xf32, #tpu.memory_space<vmem>>) attributes {dimension_semantics = [#tpu.dimension_semantics<arbitrary>, #tpu.dimension_semantics<arbitrary>], iteration_bounds = array<i64: 4, 1>, scalar_prefetch = 0 : i64, scratch_operands = 0 : i64, tpu.core_type = #tpu.core_type<tc>, window_params = [{transform_indices = @transform_0, window_bounds = array<i64: 1, 128, 32>}, {transform_indices = @transform_1, window_bounds = array<i64: 1, 32, 4>}, {pipeline_mode = #tpu.pipeline_mode<synchronous>, transform_indices = @transform_2, window_bounds = array<i64: 1, 4>}, {transform_indices = @transform_3, window_bounds = array<i64: 1, 128, 4>}, {pipeline_mode = #tpu.pipeline_mode<synchronous>, transform_indices = @transform_4, window_bounds = array<i64: 1, 4>}, {pipeline_mode = #tpu.pipeline_mode<synchronous>, transform_indices = @transform_5, window_bounds = array<i64: 1, 4>}]} {
    %c0_i32 = arith.constant 0 : i32
    %0 = arith.cmpi eq, %arg0, %c0_i32 : i32
    %c0_i32_0 = arith.constant 0 : i32
    %1 = arith.cmpi eq, %arg1, %c0_i32_0 : i32
    %2 = arith.andi %0, %1 : i1
    %3 = arith.extui %2 : i1 to i32
    %c0_i32_1 = arith.constant 0 : i32
    %4 = arith.cmpi ne, %3, %c0_i32_1 : i32
    scf.if %4 {
      %cst_24 = arith.constant 0.000000e+00 : f32
      %37 = vector.broadcast %cst_24 : f32 to vector<1x4xf32>
      %c0_25 = arith.constant 0 : index
      %c0_26 = arith.constant 0 : index
      %38 = vector.load %arg6[%c0_25, %c0_26] : memref<1x4xf32, #tpu.memory_space<vmem>>, vector<1x4xf32>
      tpu.vector_store %arg6[%c0_25, %c0_26], %37 {strides = array<i32>} : memref<1x4xf32, #tpu.memory_space<vmem>>, vector<1x4xf32>,
      %cst_27 = arith.constant 0.000000e+00 : f32
      %39 = vector.broadcast %cst_27 : f32 to vector<1x4xf32>
      %c0_28 = arith.constant 0 : index
      %c0_29 = arith.constant 0 : index
      %40 = vector.load %arg7[%c0_28, %c0_29] : memref<1x4xf32, #tpu.memory_space<vmem>>, vector<1x4xf32>
      tpu.vector_store %arg7[%c0_28, %c0_29], %39 {strides = array<i32>} : memref<1x4xf32, #tpu.memory_space<vmem>>, vector<1x4xf32>,
    } else {
    }
    %c0 = arith.constant 0 : index
    %c0_2 = arith.constant 0 : index
    %c0_3 = arith.constant 0 : index
    %5 = vector.load %arg2[%c0, %c0_2, %c0_3] : memref<1x128x32xbf16, #tpu.memory_space<vmem>>, vector<1x128x32xbf16>
    %6 = vector.shape_cast %5 : vector<1x128x32xbf16> to vector<128x32xbf16>
    %c0_4 = arith.constant 0 : index
    %c0_5 = arith.constant 0 : index
    %c0_6 = arith.constant 0 : index
    %7 = vector.load %arg3[%c0_4, %c0_5, %c0_6] : memref<1x32x4xbf16, #tpu.memory_space<vmem>>, vector<1x32x4xbf16>
    %8 = vector.shape_cast %7 : vector<1x32x4xbf16> to vector<32x4xbf16>
    %cst = arith.constant dense<0.000000e+00> : vector<128x4xf32>
    %9 = tpu.matmul %6, %8, %cst {dimension_numbers = #tpu.dot_dimension_numbers<[1], [0], [0], [1], [0, 0, 1, 1], [], []>} : vector<128x32xbf16>, vector<32x4xbf16>, vector<128x4xf32> -> vector<128x4xf32>
    %c0_7 = arith.constant 0 : index
    %c0_8 = arith.constant 0 : index
    %10 = vector.load %arg4[%c0_7, %c0_8] : memref<1x4xf32, #tpu.memory_space<vmem>>, vector<1x4xf32>
    %11 = vector.broadcast %10 : vector<1x4xf32> to vector<128x4xf32>
    %12 = arith.addf %9, %11 : vector<128x4xf32>
    %c0_9 = arith.constant 0 : index
    %c0_10 = arith.constant 0 : index
    %c0_11 = arith.constant 0 : index
    %13 = vector.load %arg5[%c0_9, %c0_10, %c0_11] : memref<1x128x4xf32, #tpu.memory_space<vmem>>, vector<1x128x4xf32>
    %14 = vector.shape_cast %13 : vector<1x128x4xf32> to vector<128x4xf32>
    %15 = vector.shape_cast %12 : vector<128x4xf32> to vector<1x128x4xf32>
    tpu.vector_store %arg5[%c0_9, %c0_10, %c0_11], %15 {strides = array<i32>} : memref<1x128x4xf32, #tpu.memory_space<vmem>>, vector<1x128x4xf32>,
    %16 = tpu.iota {dimensions = array<i32: 0>} : vector<128x1xi32>
    %c128_i32 = arith.constant 128 : i32
    %17 = arith.muli %arg1, %c128_i32 : i32
    %18 = vector.broadcast %17 : i32 to vector<128x1xi32>
    %19 = arith.addi %16, %18 : vector<128x1xi32>
    %c128_i32_12 = arith.constant 128 : i32
    %20 = vector.broadcast %c128_i32_12 : i32 to vector<128x1xi32>
    %21 = arith.cmpi slt, %19, %20 : vector<128x1xi32>
    %cst_13 = arith.constant 0.000000e+00 : f32
    %22 = vector.shape_cast %21 : vector<128x1xi1> to vector<128x1xi1>
    %23 = vector.broadcast %22 : vector<128x1xi1> to vector<128x4xi1>
    %24 = vector.broadcast %cst_13 : f32 to vector<128x4xf32>
    %25 = arith.select %23, %12, %24 : vector<128x4xi1>, vector<128x4xf32>
    %c0_14 = arith.constant 0 : index
    %c0_15 = arith.constant 0 : index
    %26 = vector.load %arg6[%c0_14, %c0_15] : memref<1x4xf32, #tpu.memory_space<vmem>>, vector<1x4xf32>
    %cst_16 = arith.constant dense<0.000000e+00> : vector<4xf32>
    %27 = vector.multi_reduction <add>, %25, %cst_16 [0] : vector<128x4xf32> to vector<4xf32>
    %28 = vector.shape_cast %27 : vector<4xf32> to vector<1x4xf32>
    %29 = arith.addf %26, %28 : vector<1x4xf32>
    %c0_17 = arith.constant 0 : index
    %c0_18 = arith.constant 0 : index
    %30 = vector.load %arg6[%c0_17, %c0_18] : memref<1x4xf32, #tpu.memory_space<vmem>>, vector<1x4xf32>
    tpu.vector_store %arg6[%c0_17, %c0_18], %29 {strides = array<i32>} : memref<1x4xf32, #tpu.memory_space<vmem>>, vector<1x4xf32>,
    %c0_19 = arith.constant 0 : index
    %c0_20 = arith.constant 0 : index
    %31 = vector.load %arg7[%c0_19, %c0_20] : memref<1x4xf32, #tpu.memory_space<vmem>>, vector<1x4xf32>
    %32 = arith.mulf %25, %25 : vector<128x4xf32>
    %cst_21 = arith.constant dense<0.000000e+00> : vector<4xf32>
    %33 = vector.multi_reduction <add>, %32, %cst_21 [0] : vector<128x4xf32> to vector<4xf32>
    %34 = vector.shape_cast %33 : vector<4xf32> to vector<1x4xf32>
    %35 = arith.addf %31, %34 : vector<1x4xf32>
    %c0_22 = arith.constant 0 : index
    %c0_23 = arith.constant 0 : index
    %36 = vector.load %arg7[%c0_22, %c0_23] : memref<1x4xf32, #tpu.memory_space<vmem>>, vector<1x4xf32>
    tpu.vector_store %arg7[%c0_22, %c0_23], %35 {strides = array<i32>} : memref<1x4xf32, #tpu.memory_space<vmem>>, vector<1x4xf32>,
    return
  }
  func.func @transform_0(%arg0: i32, %arg1: i32) -> (i32, i32, i32) {
    %c0_i32 = arith.constant 0 : i32
    %c0_i32_0 = arith.constant 0 : i32
    return %arg0, %arg1, %c0_i32 : i32, i32, i32
  }
  func.func @transform_1(%arg0: i32, %arg1: i32) -> (i32, i32, i32) {
    %c0_i32 = arith.constant 0 : i32
    %c0_i32_0 = arith.constant 0 : i32
    %c0_i32_1 = arith.constant 0 : i32
    return %arg0, %c0_i32, %c0_i32_0 : i32, i32, i32
  }
  func.func @transform_2(%arg0: i32, %arg1: i32) -> (i32, i32) {
    %c0_i32 = arith.constant 0 : i32
    %c0_i32_0 = arith.constant 0 : i32
    %c0_i32_1 = arith.constant 0 : i32
    return %c0_i32, %c0_i32_0 : i32, i32
  }
  func.func @transform_3(%arg0: i32, %arg1: i32) -> (i32, i32, i32) {
    %c0_i32 = arith.constant 0 : i32
    %c0_i32_0 = arith.constant 0 : i32
    return %arg0, %arg1, %c0_i32 : i32, i32, i32
  }
  func.func @transform_4(%arg0: i32, %arg1: i32) -> (i32, i32) {
    %c0_i32 = arith.constant 0 : i32
    %c0_i32_0 = arith.constant 0 : i32
    %c0_i32_1 = arith.constant 0 : i32
    return %c0_i32, %c0_i32_0 : i32, i32
  }
  func.func @transform_5(%arg0: i32, %arg1: i32) -> (i32, i32) {
    %c0_i32 = arith.constant 0 : i32
    %c0_i32_0 = arith.constant 0 : i32
    %c0_i32_1 = arith.constant 0 : i32
    return %c0_i32, %c0_i32_0 : i32, i32
  }
}

</mosaic_0001>

<llo_original>
// kernel: forward.3
$region0: #{forward.3}
  #allocation0 [shape = 'u32[]', space=smem, size = 0x4, offset = 0x4, fixed_abs, tag = 'smem constant byte address 0x4 - core index']
  #allocation1 [shape = 'u32[72,128]{1,0:T(1,128)}', space=vmem, size = 0x9000, scoped, tag = 'internal scratch']
  %s0 = inlined_call_operand.vmem [shape: bf16[128,64], index: 0, kind: input, shape index: {}]
  %s1 = inlined_call_operand.vmem [shape: bf16[64,8], index: 1, kind: input, shape index: {}]
  %s2 = inlined_call_operand.vmem [shape: f32[1,8], index: 2, kind: input, shape index: {}]
  %s3 = inlined_call_operand.vmem [shape: bf16[128,8], index: 3, kind: output, shape index: {}]
  %s4 = sld [smem:[#allocation0]]
  $region22: #{forward.3} parent=0
    _
  %s6 = ssub.s32 1, %s4
  %s7 = scalar_select 0, %s6, %s4
  // Predicated region
  $region2: #{forward.3} parent=0 // pred_check
    _
  $region3: #{forward.3} parent=0 // pred_check_branch
    %9 = sbr.rel (0) target = $region5
  $region4: #{forward.3} parent=0 // pred_region
    _
  $region5: #{forward.3} parent=0 // pred_fallthru
    _
  // Predicated region
  $region6: #{forward.3} parent=0 // pred_check
    _
  $region7: #{forward.3} parent=0 // pred_check_branch
    %11 = sbr.rel (0) target = $region9
  $region8: #{forward.3} parent=0 // pred_region
    _
  $region9: #{forward.3} parent=0 // pred_fallthru
    _
  // Predicated region
  $region10: #{forward.3} parent=0 // pred_check
    _
  $region11: #{forward.3} parent=0 // pred_check_branch
    %13 = sbr.rel (0) target = $region13
  $region12: #{forward.3} parent=0 // pred_region
    _
  $region13: #{forward.3} parent=0 // pred_fallthru
    _
  %v15 = vld [vmem:[%s0] sm:$0xf]
  %v16 = vld [vmem:[%s0 + $0x4] sm:$0xf]
  %v17 = vld [vmem:[%s0 + $0x8] sm:$0xf]
  %v18 = vld [vmem:[%s0 + $0xc] sm:$0xf]
  %v19 = vld [vmem:[%s0 + $0x10] sm:$0xf]
  %v20 = vld [vmem:[%s0 + $0x14] sm:$0xf]
  %v21 = vld [vmem:[%s0 + $0x18] sm:$0xf]
  %v22 = vld [vmem:[%s0 + $0x1c] sm:$0xf]
  %v23 = vld [vmem:[%s0 + $0x20] sm:$0xf]
  %v24 = vld [vmem:[%s0 + $0x24] sm:$0xf]
  %v25 = vld [vmem:[%s0 + $0x28] sm:$0xf]
  %v26 = vld [vmem:[%s0 + $0x2c] sm:$0xf]
  %v27 = vld [vmem:[%s0 + $0x30] sm:$0xf]
  %v28 = vld [vmem:[%s0 + $0x34] sm:$0xf]
  %v29 = vld [vmem:[%s0 + $0x38] sm:$0xf]
  %v30 = vld [vmem:[%s0 + $0x3c] sm:$0xf]
  %v31 = vld [vmem:[%s1] sm:$0xf]
  %v32 = vld [vmem:[%s1 + $0x4] sm:$0xf]
  %v33 = vld [vmem:[%s1 + $0x8] sm:$0xf]
  %v34 = vld [vmem:[%s1 + $0xc] sm:$0xf]
  %v35 = vld [vmem:[%s1 + $0x10] sm:$0xf]
  %v36 = vld [vmem:[%s1 + $0x14] sm:$0xf]
  %v37 = vld [vmem:[%s1 + $0x18] sm:$0xf]
  %v38 = vld [vmem:[%s1 + $0x1c] sm:$0xf]
  %v39 = vld [vmem:[%s2] sm:$0x1]
  %v41 = vperm.slane %v39, 0
  %v59 = vunpack.c.l.b16 %v15
  %v60 = vunpack.c.l.b16 %v16
  %v61 = vunpack.c.l.b16 %v17
  %v62 = vunpack.c.l.b16 %v18
  %v63 = vunpack.c.l.b16 %v19
  %v64 = vunpack.c.l.b16 %v20
  %v65 = vunpack.c.l.b16 %v21
  %v66 = vunpack.c.l.b16 %v22
  %v67 = vunpack.c.l.b16 %v23
  %v68 = vunpack.c.l.b16 %v24
  %v69 = vunpack.c.l.b16 %v25
  %v70 = vunpack.c.l.b16 %v26
  %v71 = vunpack.c.l.b16 %v27
  %v72 = vunpack.c.l.b16 %v28
  %v73 = vunpack.c.l.b16 %v29
  %v74 = vunpack.c.l.b16 %v30
  %v75 = vpack.c.b16 %v60, %v59
  %v76 = vpack.c.b16 %v62, %v61
  %v77 = vpack.c.b16 %v64, %v63
  %v78 = vpack.c.b16 %v66, %v65
  %v79 = vpack.c.b16 %v68, %v67
  %v80 = vpack.c.b16 %v70, %v69
  %v81 = vpack.c.b16 %v72, %v71
  %v82 = vpack.c.b16 %v74, %v73
  %v91 = vunpack.c.l.b16 %v31
  %v92 = vunpack.c.l.b16 %v32
  %v93 = vunpack.c.l.b16 %v33
  %v94 = vunpack.c.l.b16 %v34
  %v95 = vunpack.c.l.b16 %v35
  %v96 = vunpack.c.l.b16 %v36
  %v97 = vunpack.c.l.b16 %v37
  %v98 = vunpack.c.l.b16 %v38
  %v99 = vpack.c.b16 %v92, %v91
  %v100 = vpack.c.b16 %v94, %v93
  %v101 = vpack.c.b16 %v96, %v95
  %v102 = vpack.c.b16 %v98, %v97
  %vm107 = vcmask 523264
  %v109 = vsel %vm107, %v75, 0
  %v112 = vsel %vm107, %v76, 0
  %v115 = vsel %vm107, %v77, 0
  %v118 = vsel %vm107, %v78, 0
  %v121 = vsel %vm107, %v79, 0
  %v124 = vsel %vm107, %v80, 0
  %v127 = vsel %vm107, %v81, 0
  %v130 = vsel %vm107, %v82, 0
  %132 = vmatpush.bf16.msra.mxu0 0
  %133 = vmatpush.bf16.msra.mxu0 0
  %134 = vmatpush.bf16.msra.mxu0 0
  %135 = vmatpush.bf16.msra.mxu0 0
  %136 = vmatpush.bf16.msra.mxu0 %v102
  %137 = vmatpush.bf16.msra.mxu0 %v101
  %138 = vmatpush.bf16.msra.mxu0 %v100
  %139 = vmatpush.bf16.msra.mxu0 %v99
  %140 = vmatmul.bf16.gmra.mxu0 %v109
  %v141 = vpop.f32.mrf.mxu0
  %v142 = vadd.f32 %v41, %v141
  %v143 = vpop.f32.mrf.mxu0
  %v144 = vadd.f32 %v41, %v143
  %145 = vmatmul.bf16.gmra.mxu0 %v112
  %v146 = vpop.f32.mrf.mxu0
  %v147 = vadd.f32 %v41, %v146
  %v148 = vpop.f32.mrf.mxu0
  %v149 = vadd.f32 %v41, %v148
  %150 = vmatmul.bf16.gmra.mxu0 %v115
  %v151 = vpop.f32.mrf.mxu0
  %v152 = vadd.f32 %v41, %v151
  %v153 = vpop.f32.mrf.mxu0
  %v154 = vadd.f32 %v41, %v153
  %155 = vmatmul.bf16.gmra.mxu0 %v118
  %v156 = vpop.f32.mrf.mxu0
  %v157 = vadd.f32 %v41, %v156
  %v158 = vpop.f32.mrf.mxu0
  %v159 = vadd.f32 %v41, %v158
  %160 = vmatmul.bf16.gmra.mxu0 %v121
  %v161 = vpop.f32.mrf.mxu0
  %v162 = vadd.f32 %v41, %v161
  %v163 = vpop.f32.mrf.mxu0
  %v164 = vadd.f32 %v41, %v163
  %165 = vmatmul.bf16.gmra.mxu0 %v124
  %v166 = vpop.f32.mrf.mxu0
  %v167 = vadd.f32 %v41, %v166
  %v168 = vpop.f32.mrf.mxu0
  %v169 = vadd.f32 %v41, %v168
  %170 = vmatmul.bf16.gmra.mxu0 %v127
  %v171 = vpop.f32.mrf.mxu0
  %v172 = vadd.f32 %v41, %v171
  %v173 = vpop.f32.mrf.mxu0
  %v174 = vadd.f32 %v41, %v173
  %175 = vmatmul.bf16.gmra.mxu0 %v130
  %v176 = vpop.f32.mrf.mxu0
  %v177 = vadd.f32 %v41, %v176
  %v178 = vpop.f32.mrf.mxu0
  %v179 = vadd.f32 %v41, %v178
  %180 = vdwg.mxu0
  %v181 = vmax.f32 %v142, 0.0
  %v182 = vmax.f32 %v144, 0.0
  %v183 = vmax.f32 %v147, 0.0
  %v184 = vmax.f32 %v149, 0.0
  %v185 = vmax.f32 %v152, 0.0
  %v186 = vmax.f32 %v154, 0.0
  %v187 = vmax.f32 %v157, 0.0
  %v188 = vmax.f32 %v159, 0.0
  %v189 = vmax.f32 %v162, 0.0
  %v190 = vmax.f32 %v164, 0.0
  %v191 = vmax.f32 %v167, 0.0
  %v192 = vmax.f32 %v169, 0.0
  %v193 = vmax.f32 %v172, 0.0
  %v194 = vmax.f32 %v174, 0.0
  %v195 = vmax.f32 %v177, 0.0
  %v196 = vmax.f32 %v179, 0.0
  %v197 = vpack.c.bf16 %v181, %v181
  %v198 = vpack.c.bf16 %v182, %v182
  %v199 = vpack.c.bf16 %v183, %v183
  %v200 = vpack.c.bf16 %v184, %v184
  %v201 = vpack.c.bf16 %v185, %v185
  %v202 = vpack.c.bf16 %v186, %v186
  %v203 = vpack.c.bf16 %v187, %v187
  %v204 = vpack.c.bf16 %v188, %v188
  %v205 = vpack.c.bf16 %v189, %v189
  %v206 = vpack.c.bf16 %v190, %v190
  %v207 = vpack.c.bf16 %v191, %v191
  %v208 = vpack.c.bf16 %v192, %v192
  %v209 = vpack.c.bf16 %v193, %v193
  %v210 = vpack.c.bf16 %v194, %v194
  %v211 = vpack.c.bf16 %v195, %v195
  %v212 = vpack.c.bf16 %v196, %v196
  %vm213 = vcmask 60416
  %214 = vst.msk [vmem:[%s3] sm:$0xf] %vm213, %v197
  %215 = vst.msk [vmem:[%s3 + $0x4] sm:$0xf] %vm213, %v198
  %216 = vst.msk [vmem:[%s3 + $0x8] sm:$0xf] %vm213, %v199
  %217 = vst.msk [vmem:[%s3 + $0xc] sm:$0xf] %vm213, %v200
  %218 = vst.msk [vmem:[%s3 + $0x10] sm:$0xf] %vm213, %v201
  %219 = vst.msk [vmem:[%s3 + $0x14] sm:$0xf] %vm213, %v202
  %220 = vst.msk [vmem:[%s3 + $0x18] sm:$0xf] %vm213, %v203
  %221 = vst.msk [vmem:[%s3 + $0x1c] sm:$0xf] %vm213, %v204
  %222 = vst.msk [vmem:[%s3 + $0x20] sm:$0xf] %vm213, %v205
  %223 = vst.msk [vmem:[%s3 + $0x24] sm:$0xf] %vm213, %v206
  %224 = vst.msk [vmem:[%s3 + $0x28] sm:$0xf] %vm213, %v207
  %225 = vst.msk [vmem:[%s3 + $0x2c] sm:$0xf] %vm213, %v208
  %226 = vst.msk [vmem:[%s3 + $0x30] sm:$0xf] %vm213, %v209
  %227 = vst.msk [vmem:[%s3 + $0x34] sm:$0xf] %vm213, %v210
  %228 = vst.msk [vmem:[%s3 + $0x38] sm:$0xf] %vm213, %v211
  %229 = vst.msk [vmem:[%s3 + $0x3c] sm:$0xf] %vm213, %v212
  // Predicated region
  $region14: #{forward.3} parent=0 // pred_check
    _
  $region15: #{forward.3} parent=0 // pred_check_branch
    %231 = sbr.rel (0) target = $region17
  $region16: #{forward.3} parent=0 // pred_region
    _
  $region17: #{forward.3} parent=0 // pred_fallthru
    _
  // Predicated region
  $region18: #{forward.3} parent=0 // pred_check
    _
  $region19: #{forward.3} parent=0 // pred_check_branch
    %233 = sbr.rel (0) target = $region21
  $region20: #{forward.3} parent=0 // pred_region
    _
  $region21: #{forward.3} parent=0 // pred_fallthru
    _

// kernel: forward.5
$region0: #{forward.5}
  #allocation0 [shape = 'u32[]', space=smem, size = 0x4, offset = 0x4, fixed_abs, tag = 'smem constant byte address 0x4 - core index']
  #allocation1 [shape = 'u32[72,128]{1,0:T(1,128)}', space=vmem, size = 0x9000, scoped, tag = 'internal scratch']
  %s0 = inlined_call_operand.vmem [shape: f32[4,128,4], index: 0, kind: input, shape index: {}]
  %s1 = inlined_call_operand.vmem [shape: f32[1,1,4], index: 1, kind: input, shape index: {}]
  %s2 = inlined_call_operand.vmem [shape: f32[1,1,4], index: 2, kind: input, shape index: {}]
  %s3 = inlined_call_operand.vmem [shape: f32[4,128,4], index: 3, kind: output, shape index: {}]
  %s4 = sld [smem:[#allocation0]]
  $region45: #{forward.5} parent=0
    _
  %s6 = ssub.s32 1, %s4
  %s7 = scalar_select 0, %s6, %s4
  loop: start=0, step=1, limit=6
  $region2: #{forward.5} parent=0 // loop_pre_header
    _
  $region3: #{forward.5} parent=0 // loop_header
    %s9 = sphi 0, %s13
    %p10 = scmp.ge.s32.totalorder %s9, 6
    %s16 = sphi 0, %s28
    %s17 = sphi 0, %s24
    %s18 = sphi 0, %s16
    %s19 = sphi 0, %s17
    %s20 = sphi 0, %s18
    %s21 = sphi 0, %s19
    %s33 = sphi 0, %s35
    %s36 = sphi 0, %s33
    %s37 = sphi 0, %s36
    %s53 = sphi 0, %s37
    %s57 = sphi 0, %s57
    %s59 = sphi 0, %s57
    %s60 = sphi 0, %s59
    %s74 = sphi 0, %s60
    %s78 = sphi 0, %s78
    %s80 = sphi 0, %s78
    %s81 = sphi 0, %s80
    %s95 = sphi 0, %s81
    %s103 = sphi 0, %s105
    %s106 = sphi 0, %s103
    %s107 = sphi 0, %s106
    %s123 = sphi 0, %s107
  $region4: #{forward.5} parent=0 // loop_header_branch
    %12 = sbr.rel (%p10) target = $region8
  $region5: #{forward.5} parent=0 // loop_body
    %s14 = ssub.s32 %s9, 1
    %s15 = ssub.s32 %s9, 2
    %s22 = sadd.s32 1, %s17
    %p23 = scmp.ge.s32.totalorder %s22, 1
    %s24 = scalar_select %p23, 0, %s22
    %s25 = sadd.s32 1, %s16
    %s26 = scalar_select %p23, %s25, %s16
    %p27 = scmp.ge.s32.totalorder %s26, 4
    %s28 = scalar_select %p27, 0, %s26
    %s29 = ssub.s32 %s16, %s28
    %s30 = ssub.s32 %s17, %s24
    %s31 = sor.u32 %s29, %s30
    %p32 = scmp.eq.s32.totalorder %s31, 0
    %s34 = sadd.s32 %s33, 1
    %s35 = scalar_select %p32, %s33, %s34
    %p38 = pneg %p32
    %p39 = scmp.eq.s32.totalorder %s9, 3
    %p40 = por %p38, %p39
    %p41 = scmp.ne.s32.totalorder %s33, %s36
    %p42 = scmp.eq.s32.totalorder %s9, 0
    %p43 = por %p41, %p42
    %p44 = scmp.ne.s32.totalorder %s33, %s36
    %p45 = scmp.eq.s32.totalorder %s14, 3
    %p46 = por %p44, %p45
    %p47 = scmp.ne.s32.totalorder %s36, %s37
    %p48 = scmp.eq.s32.totalorder %s14, 0
    %p49 = por %p47, %p48
    %p50 = scmp.ne.s32.totalorder %s36, %s37
    %p51 = scmp.eq.s32.totalorder %s15, 3
    %p52 = por %p50, %p51
    %p54 = scmp.ne.s32.totalorder %s37, %s53
    %p55 = scmp.eq.s32.totalorder %s15, 0
    %p56 = por %p54, %p55
    %s58 = sadd.s32 %s57, 1
    %p61 = scmp.eq.s32.totalorder %s9, 3
    %p62 = scmp.ne.s32.totalorder %s57, %s59
    %p63 = scmp.eq.s32.totalorder %s9, 0
    %p64 = por %p62, %p63
    %p65 = scmp.ne.s32.totalorder %s57, %s59
    %p66 = scmp.eq.s32.totalorder %s14, 3
    %p67 = por %p65, %p66
    %p68 = scmp.ne.s32.totalorder %s59, %s60
    %p69 = scmp.eq.s32.totalorder %s14, 0
    %p70 = por %p68, %p69
    %p71 = scmp.ne.s32.totalorder %s59, %s60
    %p72 = scmp.eq.s32.totalorder %s15, 3
    %p73 = por %p71, %p72
    %p75 = scmp.ne.s32.totalorder %s60, %s74
    %p76 = scmp.eq.s32.totalorder %s15, 0
    %p77 = por %p75, %p76
    %s79 = sadd.s32 %s78, 1
    %p82 = scmp.eq.s32.totalorder %s9, 3
    %p83 = scmp.ne.s32.totalorder %s78, %s80
    %p84 = scmp.eq.s32.totalorder %s9, 0
    %p85 = por %p83, %p84
    %p86 = scmp.ne.s32.totalorder %s78, %s80
    %p87 = scmp.eq.s32.totalorder %s14, 3
    %p88 = por %p86, %p87
    %p89 = scmp.ne.s32.totalorder %s80, %s81
    %p90 = scmp.eq.s32.totalorder %s14, 0
    %p91 = por %p89, %p90
    %p92 = scmp.ne.s32.totalorder %s80, %s81
    %p93 = scmp.eq.s32.totalorder %s15, 3
    %p94 = por %p92, %p93
    %p96 = scmp.ne.s32.totalorder %s81, %s95
    %p97 = scmp.eq.s32.totalorder %s15, 0
    %p98 = por %p96, %p97
    %s99 = ssub.s32 %s16, %s28
    %s100 = ssub.s32 %s17, %s24
    %s101 = sor.u32 %s99, %s100
    %p102 = scmp.eq.s32.totalorder %s101, 0
    %s104 = sadd.s32 %s103, 1
    %s105 = scalar_select %p102, %s103, %s104
    %p108 = pneg %p102
    %p109 = scmp.eq.s32.totalorder %s9, 3
    %p110 = por %p108, %p109
    %p111 = scmp.ne.s32.totalorder %s103, %s106
    %p112 = scmp.eq.s32.totalorder %s9, 0
    %p113 = por %p111, %p112
    %p114 = scmp.ne.s32.totalorder %s103, %s106
    %p115 = scmp.eq.s32.totalorder %s14, 3
    %p116 = por %p114, %p115
    %p117 = scmp.ne.s32.totalorder %s106, %s107
    %p118 = scmp.eq.s32.totalorder %s14, 0
    %p119 = por %p117, %p118
    %p120 = scmp.ne.s32.totalorder %s106, %s107
    %p121 = scmp.eq.s32.totalorder %s15, 3
    %p122 = por %p120, %p121
    %p124 = scmp.ne.s32.totalorder %s107, %s123
    %p125 = scmp.eq.s32.totalorder %s15, 0
    %p126 = por %p124, %p125
    %p127 = scmp.le.s32.totalorder 1, %s9
    %p128 = scmp.lt.s32.totalorder %s9, 5
    %p129 = pnand %p127, %p128
    %p130 = pneg %p129
    // Predicated region
    $region9: #{forward.5} parent=5 // pred_check
      _
    $region10: #{forward.5} parent=5 // pred_check_branch
      %132 = sbr.rel (%p129) target = $region12
    $region11: #{forward.5} parent=5 // pred_region
      %s133 = ssub.s32 %s9, 1
      // Predicated region
      $region13: #{forward.5} parent=11 // pred_check
        %p134 = pneg %p70
      $region14: #{forward.5} parent=11 // pred_check_branch
        %136 = sbr.rel (%p134) target = $region16
      $region15: #{forward.5} parent=11 // pred_region
        _
      $region16: #{forward.5} parent=11 // pred_fallthru
        _
      // Predicated region
      $region17: #{forward.5} parent=11 // pred_check
        %p137 = pneg %p91
      $region18: #{forward.5} parent=11 // pred_check_branch
        %139 = sbr.rel (%p137) target = $region20
      $region19: #{forward.5} parent=11 // pred_region
        _
      $region20: #{forward.5} parent=11 // pred_fallthru
        _
    $region12: #{forward.5} parent=5 // pred_fallthru
      _
    %p140 = scmp.lt.s32.totalorder %s9, 4
    // Predicated region
    $region21: #{forward.5} parent=5 // pred_check
      %p141 = pneg %p140
    $region22: #{forward.5} parent=5 // pred_check_branch
      %143 = sbr.rel (%p141) target = $region24
    $region23: #{forward.5} parent=5 // pred_region
      // Predicated region
      $region25: #{forward.5} parent=23 // pred_check
        %p144 = pneg %p43
      $region26: #{forward.5} parent=23 // pred_check_branch
        %146 = sbr.rel (%p144) target = $region28
      $region27: #{forward.5} parent=23 // pred_region
        %s147 = smul.u32 16, %s17
        %p148 = scmp.lt.s32.totalorder %s16, 3
        %s149 = scalar_select %p148, %s16, 3
        %p150 = scmp.lt.s32.totalorder %s147, 15
        %s151 = scalar_select %p150, %s147, 15
        %s152 = smul.addr %s149, 16
        %s153 = sadd.s32 %s151, %s152
        %s154 = smul.addr %s153, 8
        %s155 = scalar_lea.vmem %s0, %s154
        %s156 = smul.u32 16, %s17
      $region28: #{forward.5} parent=23 // pred_fallthru
        _
    $region24: #{forward.5} parent=5 // pred_fallthru
      _
    %p157 = scmp.le.s32.totalorder 1, %s9
    %p158 = scmp.lt.s32.totalorder %s9, 5
    %p159 = pnand %p157, %p158
    %p160 = pneg %p159
    // Predicated region
    $region29: #{forward.5} parent=5 // pred_check
      _
    $region30: #{forward.5} parent=5 // pred_check_branch
      %162 = sbr.rel (%p159) target = $region32
    $region31: #{forward.5} parent=5 // pred_region
      %s163 = ssub.s32 %s9, 1
      %s164 = smul.u32 16, %s19
      %p165 = scmp.lt.s32.totalorder %s18, 3
      %s166 = scalar_select %p165, %s18, 3
      %p167 = scmp.lt.s32.totalorder %s164, 15
      %s168 = scalar_select %p167, %s164, 15
      %s169 = smul.addr %s166, 16
      %s170 = sadd.s32 %s168, %s169
      %s171 = smul.addr %s170, 8
      %s172 = scalar_lea.vmem %s0, %s171
      %p173 = pneg %p49
      %p174 = pneg %p46
      %p175 = pneg %p70
      %p176 = pneg %p67
      %p177 = pneg %p91
      %p178 = pneg %p88
      %p179 = pneg %p119
      %p180 = pneg %p116
      %s181 = smul.u32 16, %s19
      %p182 = scmp.lt.s32.totalorder %s18, 3
      %s183 = scalar_select %p182, %s18, 3
      %p184 = scmp.lt.s32.totalorder %s181, 15
      %s185 = scalar_select %p184, %s181, 15
      %s186 = smul.addr %s183, 16
      %s187 = sadd.s32 %s185, %s186
      %s188 = smul.addr %s187, 8
      %s189 = scalar_lea.vmem %s3, %s188
      %s190 = smul.u32 16, %s19
      %p191 = scmp.lt.s32.totalorder %s18, 3
      %s192 = scalar_select %p191, %s18, 3
      %p193 = scmp.lt.s32.totalorder %s190, 15
      %s194 = scalar_select %p193, %s190, 15
      %s195 = smul.addr %s192, 16
      %s196 = sadd.s32 %s194, %s195
      %s197 = smul.addr %s196, 8
      %s198 = scalar_lea.vmem %s0, %s197
      %s199 = smul.u32 16, %s19
      %s200 = smul.u32 16, %s19
      %p201 = scmp.lt.s32.totalorder %s18, 3
      %s202 = scalar_select %p201, %s18, 3
      %p203 = scmp.lt.s32.totalorder %s200, 15
      %s204 = scalar_select %p203, %s200, 15
      %s205 = smul.addr %s202, 16
      %s206 = sadd.s32 %s204, %s205
      %s207 = smul.addr %s206, 8
      %s208 = scalar_lea.vmem %s3, %s207
      %s209 = smul.u32 16, %s19
      %v210 = vld [vmem:[%s198] sm:$0xff]
      %v211 = vld [vmem:[%s198 + $0x8] sm:$0xff]
      %v212 = vld [vmem:[%s198 + $0x10] sm:$0xff]
      %v213 = vld [vmem:[%s198 + $0x18] sm:$0xff]
      %v214 = vld [vmem:[%s198 + $0x20] sm:$0xff]
      %v215 = vld [vmem:[%s198 + $0x28] sm:$0xff]
      %v216 = vld [vmem:[%s198 + $0x30] sm:$0xff]
      %v217 = vld [vmem:[%s198 + $0x38] sm:$0xff]
      %v218 = vld [vmem:[%s198 + $0x40] sm:$0xff]
      %v219 = vld [vmem:[%s198 + $0x48] sm:$0xff]
      %v220 = vld [vmem:[%s198 + $0x50] sm:$0xff]
      %v221 = vld [vmem:[%s198 + $0x58] sm:$0xff]
      %v222 = vld [vmem:[%s198 + $0x60] sm:$0xff]
      %v223 = vld [vmem:[%s198 + $0x68] sm:$0xff]
      %v224 = vld [vmem:[%s198 + $0x70] sm:$0xff]
      %v225 = vld [vmem:[%s198 + $0x78] sm:$0xff]
      %v226 = vld [vmem:[%s1] sm:$0x1]
      %v228 = vperm.slane %v226, 0
      %v230 = vmul.f32 %v210, %v228
      %v231 = vmul.f32 %v211, %v228
      %v232 = vmul.f32 %v212, %v228
      %v233 = vmul.f32 %v213, %v228
      %v234 = vmul.f32 %v214, %v228
      %v235 = vmul.f32 %v215, %v228
      %v236 = vmul.f32 %v216, %v228
      %v237 = vmul.f32 %v217, %v228
      %v238 = vmul.f32 %v218, %v228
      %v239 = vmul.f32 %v219, %v228
      %v240 = vmul.f32 %v220, %v228
      %v241 = vmul.f32 %v221, %v228
      %v242 = vmul.f32 %v222, %v228
      %v243 = vmul.f32 %v223, %v228
      %v244 = vmul.f32 %v224, %v228
      %v245 = vmul.f32 %v225, %v228
      %v246 = vld [vmem:[%s2] sm:$0x1]
      %v248 = vperm.slane %v246, 0
      %v250 = vadd.f32 %v230, %v248
      %v251 = vadd.f32 %v231, %v248
      %v252 = vadd.f32 %v232, %v248
      %v253 = vadd.f32 %v233, %v248
      %v254 = vadd.f32 %v234, %v248
      %v255 = vadd.f32 %v235, %v248
      %v256 = vadd.f32 %v236, %v248
      %v257 = vadd.f32 %v237, %v248
      %v258 = vadd.f32 %v238, %v248
      %v259 = vadd.f32 %v239, %v248
      %v260 = vadd.f32 %v240, %v248
      %v261 = vadd.f32 %v241, %v248
      %v262 = vadd.f32 %v242, %v248
      %v263 = vadd.f32 %v243, %v248
      %v264 = vadd.f32 %v244, %v248
      %v265 = vadd.f32 %v245, %v248
      %vm266 = vcmask 31744
      %267 = vst.msk [vmem:[%s208] sm:$0xff] %vm266, %v250
      %268 = vst.msk [vmem:[%s208 + $0x8] sm:$0xff] %vm266, %v251
      %269 = vst.msk [vmem:[%s208 + $0x10] sm:$0xff] %vm266, %v252
      %270 = vst.msk [vmem:[%s208 + $0x18] sm:$0xff] %vm266, %v253
      %271 = vst.msk [vmem:[%s208 + $0x20] sm:$0xff] %vm266, %v254
      %272 = vst.msk [vmem:[%s208 + $0x28] sm:$0xff] %vm266, %v255
      %273 = vst.msk [vmem:[%s208 + $0x30] sm:$0xff] %vm266, %v256
      %274 = vst.msk [vmem:[%s208 + $0x38] sm:$0xff] %vm266, %v257
      %275 = vst.msk [vmem:[%s208 + $0x40] sm:$0xff] %vm266, %v258
      %276 = vst.msk [vmem:[%s208 + $0x48] sm:$0xff] %vm266, %v259
      %277 = vst.msk [vmem:[%s208 + $0x50] sm:$0xff] %vm266, %v260
      %278 = vst.msk [vmem:[%s208 + $0x58] sm:$0xff] %vm266, %v261
      %279 = vst.msk [vmem:[%s208 + $0x60] sm:$0xff] %vm266, %v262
      %280 = vst.msk [vmem:[%s208 + $0x68] sm:$0xff] %vm266, %v263
      %281 = vst.msk [vmem:[%s208 + $0x70] sm:$0xff] %vm266, %v264
      %282 = vst.msk [vmem:[%s208 + $0x78] sm:$0xff] %vm266, %v265
      %s283 = smul.u32 16, %s19
      %p284 = scmp.lt.s32.totalorder %s18, 3
      %s285 = scalar_select %p284, %s18, 3
      %p286 = scmp.lt.s32.totalorder %s283, 15
      %s287 = scalar_select %p286, %s283, 15
      %s288 = smul.addr %s285, 16
      %s289 = sadd.s32 %s287, %s288
      %s290 = smul.addr %s289, 8
      %s291 = scalar_lea.vmem %s3, %s290
      // Predicated region
      $region33: #{forward.5} parent=31 // pred_check
        %p292 = pneg %p116
      $region34: #{forward.5} parent=31 // pred_check_branch
        %294 = sbr.rel (%p292) target = $region36
      $region35: #{forward.5} parent=31 // pred_region
        %s295 = smul.u32 16, %s19
      $region36: #{forward.5} parent=31 // pred_fallthru
        _
    $region32: #{forward.5} parent=5 // pred_fallthru
      _
    %p296 = scmp.le.s32.totalorder 2, %s9
    // Predicated region
    $region37: #{forward.5} parent=5 // pred_check
      %p297 = pneg %p296
    $region38: #{forward.5} parent=5 // pred_check_branch
      %299 = sbr.rel (%p297) target = $region40
    $region39: #{forward.5} parent=5 // pred_region
      %s300 = ssub.s32 %s9, 2
      // Predicated region
      $region41: #{forward.5} parent=39 // pred_check
        %p301 = pneg %p122
      $region42: #{forward.5} parent=39 // pred_check_branch
        %303 = sbr.rel (%p301) target = $region44
      $region43: #{forward.5} parent=39 // pred_region
        %s304 = smul.u32 16, %s21
        %p305 = scmp.lt.s32.totalorder %s20, 3
        %s306 = scalar_select %p305, %s20, 3
        %p307 = scmp.lt.s32.totalorder %s304, 15
        %s308 = scalar_select %p307, %s304, 15
        %s309 = smul.addr %s306, 16
        %s310 = sadd.s32 %s308, %s309
        %s311 = smul.addr %s310, 8
        %s312 = scalar_lea.vmem %s3, %s311
      $region44: #{forward.5} parent=39 // pred_fallthru
        _
    $region40: #{forward.5} parent=5 // pred_fallthru
      _
  $region6: #{forward.5} parent=0 // loop_footer
    %s13 = sadd.s32 1, %s9
  $region7: #{forward.5} parent=0 // loop_footer_branch
    %8 = sbr.rel target = $region3
  $region8: #{forward.5} parent=0 // loop_exit
    _

// kernel: forward.4
$region0: #{forward.4}
  #allocation0 [shape = 'u32[]', space=smem, size = 0x4, offset = 0x4, fixed_abs, tag = 'smem constant byte address 0x4 - core index']
  #allocation1 [shape = 'u32[72,128]{1,0:T(1,128)}', space=vmem, size = 0x9000, scoped, tag = 'internal scratch']
  %s0 = inlined_call_operand.vmem [shape: bf16[4,128,32], index: 0, kind: input, shape index: {}]
  %s1 = inlined_call_operand.vmem [shape: bf16[4,32,4], index: 1, kind: input, shape index: {}]
  %s2 = inlined_call_operand.vmem [shape: f32[1,4], index: 2, kind: input, shape index: {}]
  %s3 = inlined_call_operand.vmem [shape: f32[4,128,4], index: 3, kind: output, shape index: {0}]
  %s4 = inlined_call_operand.vmem [shape: f32[1,4], index: 4, kind: output, shape index: {1}]
  %s5 = inlined_call_operand.vmem [shape: f32[1,4], index: 5, kind: output, shape index: {2}]
  %6 = xla_tuple %s3, %s4, %s5
  %s7 = sld [smem:[#allocation0]]
  $region65: #{forward.4} parent=0
    _
  %s9 = ssub.s32 1, %s7
  %s10 = scalar_select 0, %s9, %s7
  loop: start=0, step=1, limit=6
  $region2: #{forward.4} parent=0 // loop_pre_header
    _
  $region3: #{forward.4} parent=0 // loop_header
    %s12 = sphi 0, %s16
    %p13 = scmp.ge.s32.totalorder %s12, 6
    %s19 = sphi 0, %s31
    %s20 = sphi 0, %s27
    %s21 = sphi 0, %s19
    %s22 = sphi 0, %s20
    %s23 = sphi 0, %s21
    %s24 = sphi 0, %s22
    %s36 = sphi 0, %s38
    %s39 = sphi 0, %s36
    %s40 = sphi 0, %s39
    %s56 = sphi 0, %s40
    %s62 = sphi 0, %s64
    %s65 = sphi 0, %s62
    %s66 = sphi 0, %s65
    %s82 = sphi 0, %s66
    %s86 = sphi 0, %s86
    %s88 = sphi 0, %s86
    %s89 = sphi 0, %s88
    %s103 = sphi 0, %s89
    %s111 = sphi 0, %s113
    %s114 = sphi 0, %s111
    %s115 = sphi 0, %s114
    %s131 = sphi 0, %s115
    %s135 = sphi 0, %s135
    %s137 = sphi 0, %s135
    %s138 = sphi 0, %s137
    %s152 = sphi 0, %s138
    %s156 = sphi 0, %s156
    %s158 = sphi 0, %s156
    %s159 = sphi 0, %s158
    %s173 = sphi 0, %s159
  $region4: #{forward.4} parent=0 // loop_header_branch
    %15 = sbr.rel (%p13) target = $region8
  $region5: #{forward.4} parent=0 // loop_body
    %s17 = ssub.s32 %s12, 1
    %s18 = ssub.s32 %s12, 2
    %s25 = sadd.s32 1, %s20
    %p26 = scmp.ge.s32.totalorder %s25, 1
    %s27 = scalar_select %p26, 0, %s25
    %s28 = sadd.s32 1, %s19
    %s29 = scalar_select %p26, %s28, %s19
    %p30 = scmp.ge.s32.totalorder %s29, 4
    %s31 = scalar_select %p30, 0, %s29
    %s32 = ssub.s32 %s19, %s31
    %s33 = ssub.s32 %s20, %s27
    %s34 = sor.u32 %s32, %s33
    %p35 = scmp.eq.s32.totalorder %s34, 0
    %s37 = sadd.s32 %s36, 1
    %s38 = scalar_select %p35, %s36, %s37
    %p41 = pneg %p35
    %p42 = scmp.eq.s32.totalorder %s12, 3
    %p43 = por %p41, %p42
    %p44 = scmp.ne.s32.totalorder %s36, %s39
    %p45 = scmp.eq.s32.totalorder %s12, 0
    %p46 = por %p44, %p45
    %p47 = scmp.ne.s32.totalorder %s36, %s39
    %p48 = scmp.eq.s32.totalorder %s17, 3
    %p49 = por %p47, %p48
    %p50 = scmp.ne.s32.totalorder %s39, %s40
    %p51 = scmp.eq.s32.totalorder %s17, 0
    %p52 = por %p50, %p51
    %p53 = scmp.ne.s32.totalorder %s39, %s40
    %p54 = scmp.eq.s32.totalorder %s18, 3
    %p55 = por %p53, %p54
    %p57 = scmp.ne.s32.totalorder %s40, %s56
    %p58 = scmp.eq.s32.totalorder %s18, 0
    %p59 = por %p57, %p58
    %s60 = ssub.s32 %s19, %s31
    %p61 = scmp.eq.s32.totalorder %s60, 0
    %s63 = sadd.s32 %s62, 1
    %s64 = scalar_select %p61, %s62, %s63
    %p67 = pneg %p61
    %p68 = scmp.eq.s32.totalorder %s12, 3
    %p69 = por %p67, %p68
    %p70 = scmp.ne.s32.totalorder %s62, %s65
    %p71 = scmp.eq.s32.totalorder %s12, 0
    %p72 = por %p70, %p71
    %p73 = scmp.ne.s32.totalorder %s62, %s65
    %p74 = scmp.eq.s32.totalorder %s17, 3
    %p75 = por %p73, %p74
    %p76 = scmp.ne.s32.totalorder %s65, %s66
    %p77 = scmp.eq.s32.totalorder %s17, 0
    %p78 = por %p76, %p77
    %p79 = scmp.ne.s32.totalorder %s65, %s66
    %p80 = scmp.eq.s32.totalorder %s18, 3
    %p81 = por %p79, %p80
    %p83 = scmp.ne.s32.totalorder %s66, %s82
    %p84 = scmp.eq.s32.totalorder %s18, 0
    %p85 = por %p83, %p84
    %s87 = sadd.s32 %s86, 1
    %p90 = scmp.eq.s32.totalorder %s12, 3
    %p91 = scmp.ne.s32.totalorder %s86, %s88
    %p92 = scmp.eq.s32.totalorder %s12, 0
    %p93 = por %p91, %p92
    %p94 = scmp.ne.s32.totalorder %s86, %s88
    %p95 = scmp.eq.s32.totalorder %s17, 3
    %p96 = por %p94, %p95
    %p97 = scmp.ne.s32.totalorder %s88, %s89
    %p98 = scmp.eq.s32.totalorder %s17, 0
    %p99 = por %p97, %p98
    %p100 = scmp.ne.s32.totalorder %s88, %s89
    %p101 = scmp.eq.s32.totalorder %s18, 3
    %p102 = por %p100, %p101
    %p104 = scmp.ne.s32.totalorder %s89, %s103
    %p105 = scmp.eq.s32.totalorder %s18, 0
    %p106 = por %p104, %p105
    %s107 = ssub.s32 %s19, %s31
    %s108 = ssub.s32 %s20, %s27
    %s109 = sor.u32 %s107, %s108
    %p110 = scmp.eq.s32.totalorder %s109, 0
    %s112 = sadd.s32 %s111, 1
    %s113 = scalar_select %p110, %s111, %s112
    %p116 = pneg %p110
    %p117 = scmp.eq.s32.totalorder %s12, 3
    %p118 = por %p116, %p117
    %p119 = scmp.ne.s32.totalorder %s111, %s114
    %p120 = scmp.eq.s32.totalorder %s12, 0
    %p121 = por %p119, %p120
    %p122 = scmp.ne.s32.totalorder %s111, %s114
    %p123 = scmp.eq.s32.totalorder %s17, 3
    %p124 = por %p122, %p123
    %p125 = scmp.ne.s32.totalorder %s114, %s115
    %p126 = scmp.eq.s32.totalorder %s17, 0
    %p127 = por %p125, %p126
    %p128 = scmp.ne.s32.totalorder %s114, %s115
    %p129 = scmp.eq.s32.totalorder %s18, 3
    %p130 = por %p128, %p129
    %p132 = scmp.ne.s32.totalorder %s115, %s131
    %p133 = scmp.eq.s32.totalorder %s18, 0
    %p134 = por %p132, %p133
    %s136 = sadd.s32 %s135, 1
    %p139 = scmp.eq.s32.totalorder %s12, 3
    %p140 = scmp.ne.s32.totalorder %s135, %s137
    %p141 = scmp.eq.s32.totalorder %s12, 0
    %p142 = por %p140, %p141
    %p143 = scmp.ne.s32.totalorder %s135, %s137
    %p144 = scmp.eq.s32.totalorder %s17, 3
    %p145 = por %p143, %p144
    %p146 = scmp.ne.s32.totalorder %s137, %s138
    %p147 = scmp.eq.s32.totalorder %s17, 0
    %p148 = por %p146, %p147
    %p149 = scmp.ne.s32.totalorder %s137, %s138
    %p150 = scmp.eq.s32.totalorder %s18, 3
    %p151 = por %p149, %p150
    %p153 = scmp.ne.s32.totalorder %s138, %s152
    %p154 = scmp.eq.s32.totalorder %s18, 0
    %p155 = por %p153, %p154
    %s157 = sadd.s32 %s156, 1
    %p160 = scmp.eq.s32.totalorder %s12, 3
    %p161 = scmp.ne.s32.totalorder %s156, %s158
    %p162 = scmp.eq.s32.totalorder %s12, 0
    %p163 = por %p161, %p162
    %p164 = scmp.ne.s32.totalorder %s156, %s158
    %p165 = scmp.eq.s32.totalorder %s17, 3
    %p166 = por %p164, %p165
    %p167 = scmp.ne.s32.totalorder %s158, %s159
    %p168 = scmp.eq.s32.totalorder %s17, 0
    %p169 = por %p167, %p168
    %p170 = scmp.ne.s32.totalorder %s158, %s159
    %p171 = scmp.eq.s32.totalorder %s18, 3
    %p172 = por %p170, %p171
    %p174 = scmp.ne.s32.totalorder %s159, %s173
    %p175 = scmp.eq.s32.totalorder %s18, 0
    %p176 = por %p174, %p175
    %p177 = scmp.le.s32.totalorder 1, %s12
    %p178 = scmp.lt.s32.totalorder %s12, 5
    %p179 = pnand %p177, %p178
    %p180 = pneg %p179
    // Predicated region
    $region9: #{forward.4} parent=5 // pred_check
      _
    $region10: #{forward.4} parent=5 // pred_check_branch
      %182 = sbr.rel (%p179) target = $region12
    $region11: #{forward.4} parent=5 // pred_region
      %s183 = ssub.s32 %s12, 1
      // Predicated region
      $region13: #{forward.4} parent=11 // pred_check
        %p184 = pneg %p99
      $region14: #{forward.4} parent=11 // pred_check_branch
        %186 = sbr.rel (%p184) target = $region16
      $region15: #{forward.4} parent=11 // pred_region
        _
      $region16: #{forward.4} parent=11 // pred_fallthru
        _
    $region12: #{forward.4} parent=5 // pred_fallthru
      _
    %p187 = scmp.lt.s32.totalorder %s12, 4
    // Predicated region
    $region17: #{forward.4} parent=5 // pred_check
      %p188 = pneg %p187
    $region18: #{forward.4} parent=5 // pred_check_branch
      %190 = sbr.rel (%p188) target = $region20
    $region19: #{forward.4} parent=5 // pred_region
      // Predicated region
      $region21: #{forward.4} parent=19 // pred_check
        %p191 = pneg %p46
      $region22: #{forward.4} parent=19 // pred_check_branch
        %193 = sbr.rel (%p191) target = $region24
      $region23: #{forward.4} parent=19 // pred_region
        %s194 = smul.u32 16, %s20
        %p195 = scmp.lt.s32.totalorder %s19, 3
        %s196 = scalar_select %p195, %s19, 3
        %p197 = scmp.lt.s32.totalorder %s194, 15
        %s198 = scalar_select %p197, %s194, 15
        %s199 = smul.addr %s196, 16
        %s200 = sadd.s32 %s198, %s199
        %s201 = smul.addr %s200, 4
        %s202 = scalar_lea.vmem %s0, %s201
        %s203 = smul.u32 16, %s20
      $region24: #{forward.4} parent=19 // pred_fallthru
        _
      // Predicated region
      $region25: #{forward.4} parent=19 // pred_check
        %p204 = pneg %p72
      $region26: #{forward.4} parent=19 // pred_check_branch
        %206 = sbr.rel (%p204) target = $region28
      $region27: #{forward.4} parent=19 // pred_region
        %p207 = scmp.lt.s32.totalorder %s19, 3
        %s208 = scalar_select %p207, %s19, 3
        %s209 = smul.addr %s208, 4
        %s210 = smul.addr %s209, 4
        %s211 = scalar_lea.vmem %s1, %s210
      $region28: #{forward.4} parent=19 // pred_fallthru
        _
    $region20: #{forward.4} parent=5 // pred_fallthru
      _
    %p212 = scmp.le.s32.totalorder 1, %s12
    %p213 = scmp.lt.s32.totalorder %s12, 5
    %p214 = pnand %p212, %p213
    %p215 = pneg %p214
    // Predicated region
    $region29: #{forward.4} parent=5 // pred_check
      _
    $region30: #{forward.4} parent=5 // pred_check_branch
      %217 = sbr.rel (%p214) target = $region32
    $region31: #{forward.4} parent=5 // pred_region
      %s218 = ssub.s32 %s12, 1
      %s219 = smul.u32 16, %s22
      %p220 = scmp.lt.s32.totalorder %s21, 3
      %s221 = scalar_select %p220, %s21, 3
      %p222 = scmp.lt.s32.totalorder %s219, 15
      %s223 = scalar_select %p222, %s219, 15
      %s224 = smul.addr %s221, 16
      %s225 = sadd.s32 %s223, %s224
      %s226 = smul.addr %s225, 4
      %s227 = scalar_lea.vmem %s0, %s226
      %p228 = pneg %p52
      %p229 = pneg %p49
      %p230 = scmp.lt.s32.totalorder %s21, 3
      %s231 = scalar_select %p230, %s21, 3
      %s232 = smul.addr %s231, 4
      %s233 = smul.addr %s232, 4
      %s234 = scalar_lea.vmem %s1, %s233
      %p235 = pneg %p78
      %p236 = pneg %p75
      %p237 = pneg %p99
      %p238 = pneg %p96
      %p239 = pneg %p127
      %p240 = pneg %p124
      %s241 = smul.u32 16, %s22
      %p242 = scmp.lt.s32.totalorder %s21, 3
      %s243 = scalar_select %p242, %s21, 3
      %p244 = scmp.lt.s32.totalorder %s241, 15
      %s245 = scalar_select %p244, %s241, 15
      %s246 = smul.addr %s243, 16
      %s247 = sadd.s32 %s245, %s246
      %s248 = smul.addr %s247, 8
      %s249 = scalar_lea.vmem %s3, %s248
      %p250 = pneg %p148
      %p251 = pneg %p145
      %p252 = pneg %p169
      %p253 = pneg %p166
      %s254 = smul.u32 16, %s22
      %p255 = scmp.lt.s32.totalorder %s21, 3
      %s256 = scalar_select %p255, %s21, 3
      %p257 = scmp.lt.s32.totalorder %s254, 15
      %s258 = scalar_select %p257, %s254, 15
      %s259 = smul.addr %s256, 16
      %s260 = sadd.s32 %s258, %s259
      %s261 = smul.addr %s260, 4
      %s262 = scalar_lea.vmem %s0, %s261
      %s263 = smul.u32 16, %s22
      %p264 = scmp.lt.s32.totalorder %s21, 3
      %s265 = scalar_select %p264, %s21, 3
      %s266 = smul.addr %s265, 4
      %s267 = smul.addr %s266, 4
      %s268 = scalar_lea.vmem %s1, %s267
      %s269 = smul.u32 16, %s22
      %p270 = scmp.lt.s32.totalorder %s21, 3
      %s271 = scalar_select %p270, %s21, 3
      %p272 = scmp.lt.s32.totalorder %s269, 15
      %s273 = scalar_select %p272, %s269, 15
      %s274 = smul.addr %s271, 16
      %s275 = sadd.s32 %s273, %s274
      %s276 = smul.addr %s275, 8
      %s277 = scalar_lea.vmem %s3, %s276
      %s278 = smul.u32 16, %s22
      %p280 = scmp.eq.s32.totalorder %s21, 0
      %p281 = scmp.eq.s32.totalorder %s22, 0
      %p282 = pnand %p280, %p281
      %p283 = pneg %p282
      // Predicated region
      $region33: #{forward.4} parent=31 // pred_check
        _
      $region34: #{forward.4} parent=31 // pred_check_branch
        %285 = sbr.rel (%p282) target = $region36
      $region35: #{forward.4} parent=31 // pred_region
        %vm286 = vcmask 24576
        %287 = vst.msk [vmem:[%s4] sm:$0x1] %vm286, 0.0
        %288 = vst.msk [vmem:[%s5] sm:$0x1] %vm286, 0.0
      $region36: #{forward.4} parent=31 // pred_fallthru
        _
      %v289 = vld [vmem:[%s262] sm:$0xf]
      %v290 = vld [vmem:[%s262 + $0x4] sm:$0xf]
      %v291 = vld [vmem:[%s262 + $0x8] sm:$0xf]
      %v292 = vld [vmem:[%s262 + $0xc] sm:$0xf]
      %v293 = vld [vmem:[%s262 + $0x10] sm:$0xf]
      %v294 = vld [vmem:[%s262 + $0x14] sm:$0xf]
      %v295 = vld [vmem:[%s262 + $0x18] sm:$0xf]
      %v296 = vld [vmem:[%s262 + $0x1c] sm:$0xf]
      %v297 = vld [vmem:[%s262 + $0x20] sm:$0xf]
      %v298 = vld [vmem:[%s262 + $0x24] sm:$0xf]
      %v299 = vld [vmem:[%s262 + $0x28] sm:$0xf]
      %v300 = vld [vmem:[%s262 + $0x2c] sm:$0xf]
      %v301 = vld [vmem:[%s262 + $0x30] sm:$0xf]
      %v302 = vld [vmem:[%s262 + $0x34] sm:$0xf]
      %v303 = vld [vmem:[%s262 + $0x38] sm:$0xf]
      %v304 = vld [vmem:[%s262 + $0x3c] sm:$0xf]
      %v305 = vld [vmem:[%s268] sm:$0xf]
      %v306 = vld [vmem:[%s268 + $0x4] sm:$0xf]
      %v307 = vld [vmem:[%s268 + $0x8] sm:$0xf]
      %v308 = vld [vmem:[%s268 + $0xc] sm:$0xf]
      %v309 = vld [vmem:[%s2] sm:$0x1]
      %v311 = vperm.slane %v309, 0
      %v329 = vunpack.c.l.b16 %v289
      %v330 = vunpack.c.l.b16 %v290
      %v331 = vunpack.c.l.b16 %v291
      %v332 = vunpack.c.l.b16 %v292
      %v333 = vunpack.c.l.b16 %v293
      %v334 = vunpack.c.l.b16 %v294
      %v335 = vunpack.c.l.b16 %v295
      %v336 = vunpack.c.l.b16 %v296
      %v337 = vunpack.c.l.b16 %v297
      %v338 = vunpack.c.l.b16 %v298
      %v339 = vunpack.c.l.b16 %v299
      %v340 = vunpack.c.l.b16 %v300
      %v341 = vunpack.c.l.b16 %v301
      %v342 = vunpack.c.l.b16 %v302
      %v343 = vunpack.c.l.b16 %v303
      %v344 = vunpack.c.l.b16 %v304
      %v345 = vpack.c.b16 %v330, %v329
      %v346 = vpack.c.b16 %v332, %v331
      %v347 = vpack.c.b16 %v334, %v333
      %v348 = vpack.c.b16 %v336, %v335
      %v349 = vpack.c.b16 %v338, %v337
      %v350 = vpack.c.b16 %v340, %v339
      %v351 = vpack.c.b16 %v342, %v341
      %v352 = vpack.c.b16 %v344, %v343
      %v357 = vunpack.c.l.b16 %v305
      %v358 = vunpack.c.l.b16 %v306
      %v359 = vunpack.c.l.b16 %v307
      %v360 = vunpack.c.l.b16 %v308
      %v361 = vpack.c.b16 %v358, %v357
      %v362 = vpack.c.b16 %v360, %v359
      %vm365 = vcmask 261120
      %v367 = vsel %vm365, %v345, 0
      %v370 = vsel %vm365, %v346, 0
      %v373 = vsel %vm365, %v347, 0
      %v376 = vsel %vm365, %v348, 0
      %v379 = vsel %vm365, %v349, 0
      %v382 = vsel %vm365, %v350, 0
      %v385 = vsel %vm365, %v351, 0
      %v388 = vsel %vm365, %v352, 0
      %390 = vmatpush.bf16.msra.mxu0 0
      %391 = vmatpush.bf16.msra.mxu0 0
      %392 = vmatpush.bf16.msra.mxu0 0
      %393 = vmatpush.bf16.msra.mxu0 0
      %394 = vmatpush.bf16.msra.mxu0 0
      %395 = vmatpush.bf16.msra.mxu0 0
      %396 = vmatpush.bf16.msra.mxu0 %v362
      %397 = vmatpush.bf16.msra.mxu0 %v361
      %398 = vmatmul.bf16.gmra.mxu0 %v367
      %v399 = vpop.f32.mrf.mxu0
      %v400 = vadd.f32 %v311, %v399
      %v401 = vpop.f32.mrf.mxu0
      %v402 = vadd.f32 %v311, %v401
      %403 = vmatmul.bf16.gmra.mxu0 %v370
      %v404 = vpop.f32.mrf.mxu0
      %v405 = vadd.f32 %v311, %v404
      %v406 = vpop.f32.mrf.mxu0
      %v407 = vadd.f32 %v311, %v406
      %408 = vmatmul.bf16.gmra.mxu0 %v373
      %v409 = vpop.f32.mrf.mxu0
      %v410 = vadd.f32 %v311, %v409
      %v411 = vpop.f32.mrf.mxu0
      %v412 = vadd.f32 %v311, %v411
      %413 = vmatmul.bf16.gmra.mxu0 %v376
      %v414 = vpop.f32.mrf.mxu0
      %v415 = vadd.f32 %v311, %v414
      %v416 = vpop.f32.mrf.mxu0
      %v417 = vadd.f32 %v311, %v416
      %418 = vmatmul.bf16.gmra.mxu0 %v379
      %v419 = vpop.f32.mrf.mxu0
      %v420 = vadd.f32 %v311, %v419
      %v421 = vpop.f32.mrf.mxu0
      %v422 = vadd.f32 %v311, %v421
      %423 = vmatmul.bf16.gmra.mxu0 %v382
      %v424 = vpop.f32.mrf.mxu0
      %v425 = vadd.f32 %v311, %v424
      %v426 = vpop.f32.mrf.mxu0
      %v427 = vadd.f32 %v311, %v426
      %428 = vmatmul.bf16.gmra.mxu0 %v385
      %v429 = vpop.f32.mrf.mxu0
      %v430 = vadd.f32 %v311, %v429
      %v431 = vpop.f32.mrf.mxu0
      %v432 = vadd.f32 %v311, %v431
      %433 = vmatmul.bf16.gmra.mxu0 %v388
      %v434 = vpop.f32.mrf.mxu0
      %v435 = vadd.f32 %v311, %v434
      %v436 = vpop.f32.mrf.mxu0
      %v437 = vadd.f32 %v311, %v436
      %438 = vdwg.mxu0
      %vm439 = vcmask 31744
      %440 = vst.msk [vmem:[%s277] sm:$0xff] %vm439, %v400
      %441 = vst.msk [vmem:[%s277 + $0x8] sm:$0xff] %vm439, %v402
      %442 = vst.msk [vmem:[%s277 + $0x10] sm:$0xff] %vm439, %v405
      %443 = vst.msk [vmem:[%s277 + $0x18] sm:$0xff] %vm439, %v407
      %444 = vst.msk [vmem:[%s277 + $0x20] sm:$0xff] %vm439, %v410
      %445 = vst.msk [vmem:[%s277 + $0x28] sm:$0xff] %vm439, %v412
      %446 = vst.msk [vmem:[%s277 + $0x30] sm:$0xff] %vm439, %v415
      %447 = vst.msk [vmem:[%s277 + $0x38] sm:$0xff] %vm439, %v417
      %448 = vst.msk [vmem:[%s277 + $0x40] sm:$0xff] %vm439, %v420
      %449 = vst.msk [vmem:[%s277 + $0x48] sm:$0xff] %vm439, %v422
      %450 = vst.msk [vmem:[%s277 + $0x50] sm:$0xff] %vm439, %v425
      %451 = vst.msk [vmem:[%s277 + $0x58] sm:$0xff] %vm439, %v427
      %452 = vst.msk [vmem:[%s277 + $0x60] sm:$0xff] %vm439, %v430
      %453 = vst.msk [vmem:[%s277 + $0x68] sm:$0xff] %vm439, %v432
      %454 = vst.msk [vmem:[%s277 + $0x70] sm:$0xff] %vm439, %v435
      %455 = vst.msk [vmem:[%s277 + $0x78] sm:$0xff] %vm439, %v437
      %v456 = vlaneseq
      %v457 = vshrl.u32 %v456, 7
      %v458 = vadd.s32 %v457, 8
      %v459 = vadd.s32 %v457, 16
      %v460 = vadd.s32 %v457, 24
      %v461 = vadd.s32 %v457, 32
      %v462 = vadd.s32 %v457, 40
      %v463 = vadd.s32 %v457, 48
      %v464 = vadd.s32 %v457, 56
      %v465 = vadd.s32 %v457, 64
      %v466 = vadd.s32 %v457, 72
      %v467 = vadd.s32 %v457, 80
      %v468 = vadd.s32 %v457, 88
      %v469 = vadd.s32 %v457, 96
      %v470 = vadd.s32 %v457, 104
      %v471 = vadd.s32 %v457, 112
      %v472 = vadd.s32 %v457, 120
      %s473 = smul.u32 %s22, 128
      %v474 = vstv %s473
      %v475 = vadd.s32 %v457, %v474
      %v476 = vadd.s32 %v458, %v474
      %v477 = vadd.s32 %v459, %v474
      %v478 = vadd.s32 %v460, %v474
      %v479 = vadd.s32 %v461, %v474
      %v480 = vadd.s32 %v462, %v474
      %v481 = vadd.s32 %v463, %v474
      %v482 = vadd.s32 %v464, %v474
      %v483 = vadd.s32 %v465, %v474
      %v484 = vadd.s32 %v466, %v474
      %v485 = vadd.s32 %v467, %v474
      %v486 = vadd.s32 %v468, %v474
      %v487 = vadd.s32 %v469, %v474
      %v488 = vadd.s32 %v470, %v474
      %v489 = vadd.s32 %v471, %v474
      %v490 = vadd.s32 %v472, %v474
      %vm491 = vcmp.lt.s32.totalorder %v475, 128
      %vm492 = vcmp.lt.s32.totalorder %v476, 128
      %vm493 = vcmp.lt.s32.totalorder %v477, 128
      %vm494 = vcmp.lt.s32.totalorder %v478, 128
      %vm495 = vcmp.lt.s32.totalorder %v479, 128
      %vm496 = vcmp.lt.s32.totalorder %v480, 128
      %vm497 = vcmp.lt.s32.totalorder %v481, 128
      %vm498 = vcmp.lt.s32.totalorder %v482, 128
      %vm499 = vcmp.lt.s32.totalorder %v483, 128
      %vm500 = vcmp.lt.s32.totalorder %v484, 128
      %vm501 = vcmp.lt.s32.totalorder %v485, 128
      %vm502 = vcmp.lt.s32.totalorder %v486, 128
      %vm503 = vcmp.lt.s32.totalorder %v487, 128
      %vm504 = vcmp.lt.s32.totalorder %v488, 128
      %vm505 = vcmp.lt.s32.totalorder %v489, 128
      %vm506 = vcmp.lt.s32.totalorder %v490, 128
      %v507 = vsel %vm491, 1, 0
      %v508 = vsel %vm492, 1, 0
      %v509 = vsel %vm493, 1, 0
      %v510 = vsel %vm494, 1, 0
      %v511 = vsel %vm495, 1, 0
      %v512 = vsel %vm496, 1, 0
      %v513 = vsel %vm497, 1, 0
      %v514 = vsel %vm498, 1, 0
      %v515 = vsel %vm499, 1, 0
      %v516 = vsel %vm500, 1, 0
      %v517 = vsel %vm501, 1, 0
      %v518 = vsel %vm502, 1, 0
      %v519 = vsel %vm503, 1, 0
      %v520 = vsel %vm504, 1, 0
      %v521 = vsel %vm505, 1, 0
      %v522 = vsel %vm506, 1, 0
      %vm523 = vcmp.eq.s32.totalorder %v507, 1
      %vm524 = vcmp.eq.s32.totalorder %v508, 1
      %vm525 = vcmp.eq.s32.totalorder %v509, 1
      %vm526 = vcmp.eq.s32.totalorder %v510, 1
      %vm527 = vcmp.eq.s32.totalorder %v511, 1
      %vm528 = vcmp.eq.s32.totalorder %v512, 1
      %vm529 = vcmp.eq.s32.totalorder %v513, 1
      %vm530 = vcmp.eq.s32.totalorder %v514, 1
      %vm531 = vcmp.eq.s32.totalorder %v515, 1
      %vm532 = vcmp.eq.s32.totalorder %v516, 1
      %vm533 = vcmp.eq.s32.totalorder %v517, 1
      %vm534 = vcmp.eq.s32.totalorder %v518, 1
      %vm535 = vcmp.eq.s32.totalorder %v519, 1
      %vm536 = vcmp.eq.s32.totalorder %v520, 1
      %vm537 = vcmp.eq.s32.totalorder %v521, 1
      %vm538 = vcmp.eq.s32.totalorder %v522, 1
      %v539 = vsel %vm523, %v400, 0.0
      %v540 = vsel %vm524, %v402, 0.0
      %v541 = vsel %vm525, %v405, 0.0
      %v542 = vsel %vm526, %v407, 0.0
      %v543 = vsel %vm527, %v410, 0.0
      %v544 = vsel %vm528, %v412, 0.0
      %v545 = vsel %vm529, %v415, 0.0
      %v546 = vsel %vm530, %v417, 0.0
      %v547 = vsel %vm531, %v420, 0.0
      %v548 = vsel %vm532, %v422, 0.0
      %v549 = vsel %vm533, %v425, 0.0
      %v550 = vsel %vm534, %v427, 0.0
      %v551 = vsel %vm535, %v430, 0.0
      %v552 = vsel %vm536, %v432, 0.0
      %v553 = vsel %vm537, %v435, 0.0
      %v554 = vsel %vm538, %v437, 0.0
      %v555 = vld [vmem:[%s4] sm:$0x1]
      %v556 = vsel %vm439, %v539, 0.0
      %v557 = vsel %vm439, %v540, 0.0
      %v558 = vadd.f32 %v556, %v557
      %v559 = vsel %vm439, %v541, 0.0
      %v560 = vadd.f32 %v558, %v559
      %v561 = vsel %vm439, %v542, 0.0
      %v562 = vadd.f32 %v560, %v561
      %v563 = vsel %vm439, %v543, 0.0
      %v564 = vadd.f32 %v562, %v563
      %v565 = vsel %vm439, %v544, 0.0
      %v566 = vadd.f32 %v564, %v565
      %v567 = vsel %vm439, %v545, 0.0
      %v568 = vadd.f32 %v566, %v567
      %v569 = vsel %vm439, %v546, 0.0
      %v570 = vadd.f32 %v568, %v569
      %v571 = vsel %vm439, %v547, 0.0
      %v572 = vadd.f32 %v570, %v571
      %v573 = vsel %vm439, %v548, 0.0
      %v574 = vadd.f32 %v572, %v573
      %v575 = vsel %vm439, %v549, 0.0
      %v576 = vadd.f32 %v574, %v575
      %v577 = vsel %vm439, %v550, 0.0
      %v578 = vadd.f32 %v576, %v577
      %v579 = vsel %vm439, %v551, 0.0
      %v580 = vadd.f32 %v578, %v579
      %v581 = vsel %vm439, %v552, 0.0
      %v582 = vadd.f32 %v580, %v581
      %v583 = vsel %vm439, %v553, 0.0
      %v584 = vadd.f32 %v582, %v583
      %v585 = vsel %vm439, %v554, 0.0
      %v586 = vadd.f32 %v584, %v585
      %v587 = vrot.slane %v586, 4
      %v588 = vadd.f32 %v586, %v587
      %v589 = vrot.slane %v588, 2
      %v590 = vadd.f32 %v588, %v589
      %v591 = vrot.slane %v590, 1
      %v592 = vadd.f32 %v590, %v591
      %v593 = vadd.f32 %v555, %v592
      %vm594 = vcmask 24576
      %595 = vst.msk [vmem:[%s4] sm:$0x1] %vm594, %v593
      %v596 = vld [vmem:[%s5] sm:$0x1]
      %v597 = vmul.f32 %v539, %v539
      %v598 = vmul.f32 %v540, %v540
      %v599 = vmul.f32 %v541, %v541
      %v600 = vmul.f32 %v542, %v542
      %v601 = vmul.f32 %v543, %v543
      %v602 = vmul.f32 %v544, %v544
      %v603 = vmul.f32 %v545, %v545
      %v604 = vmul.f32 %v546, %v546
      %v605 = vmul.f32 %v547, %v547
      %v606 = vmul.f32 %v548, %v548
      %v607 = vmul.f32 %v549, %v549
      %v608 = vmul.f32 %v550, %v550
      %v609 = vmul.f32 %v551, %v551
      %v610 = vmul.f32 %v552, %v552
      %v611 = vmul.f32 %v553, %v553
      %v612 = vmul.f32 %v554, %v554
      %v613 = vsel %vm439, %v597, 0.0
      %v614 = vsel %vm439, %v598, 0.0
      %v615 = vadd.f32 %v613, %v614
      %v616 = vsel %vm439, %v599, 0.0
      %v617 = vadd.f32 %v615, %v616
      %v618 = vsel %vm439, %v600, 0.0
      %v619 = vadd.f32 %v617, %v618
      %v620 = vsel %vm439, %v601, 0.0
      %v621 = vadd.f32 %v619, %v620
      %v622 = vsel %vm439, %v602, 0.0
      %v623 = vadd.f32 %v621, %v622
      %v624 = vsel %vm439, %v603, 0.0
      %v625 = vadd.f32 %v623, %v624
      %v626 = vsel %vm439, %v604, 0.0
      %v627 = vadd.f32 %v625, %v626
      %v628 = vsel %vm439, %v605, 0.0
      %v629 = vadd.f32 %v627, %v628
      %v630 = vsel %vm439, %v606, 0.0
      %v631 = vadd.f32 %v629, %v630
      %v632 = vsel %vm439, %v607, 0.0
      %v633 = vadd.f32 %v631, %v632
      %v634 = vsel %vm439, %v608, 0.0
      %v635 = vadd.f32 %v633, %v634
      %v636 = vsel %vm439, %v609, 0.0
      %v637 = vadd.f32 %v635, %v636
      %v638 = vsel %vm439, %v610, 0.0
      %v639 = vadd.f32 %v637, %v638
      %v640 = vsel %vm439, %v611, 0.0
      %v641 = vadd.f32 %v639, %v640
      %v642 = vsel %vm439, %v612, 0.0
      %v643 = vadd.f32 %v641, %v642
      %v644 = vrot.slane %v643, 4
      %v645 = vadd.f32 %v643, %v644
      %v646 = vrot.slane %v645, 2
      %v647 = vadd.f32 %v645, %v646
      %v648 = vrot.slane %v647, 1
      %v649 = vadd.f32 %v647, %v648
      %v650 = vadd.f32 %v596, %v649
      %651 = vst.msk [vmem:[%s5] sm:$0x1] %vm594, %v650
      %s652 = smul.u32 16, %s22
      %p653 = scmp.lt.s32.totalorder %s21, 3
      %s654 = scalar_select %p653, %s21, 3
      %p655 = scmp.lt.s32.totalorder %s652, 15
      %s656 = scalar_select %p655, %s652, 15
      %s657 = smul.addr %s654, 16
      %s658 = sadd.s32 %s656, %s657
      %s659 = smul.addr %s658, 8
      %s660 = scalar_lea.vmem %s3, %s659
      // Predicated region
      $region37: #{forward.4} parent=31 // pred_check
        %p661 = pneg %p124
      $region38: #{forward.4} parent=31 // pred_check_branch
        %663 = sbr.rel (%p661) target = $region40
      $region39: #{forward.4} parent=31 // pred_region
        %s664 = smul.u32 16, %s22
      $region40: #{forward.4} parent=31 // pred_fallthru
        _
      // Predicated region
      $region41: #{forward.4} parent=31 // pred_check
        %p665 = pneg %p145
      $region42: #{forward.4} parent=31 // pred_check_branch
        %667 = sbr.rel (%p665) target = $region44
      $region43: #{forward.4} parent=31 // pred_region
        _
      $region44: #{forward.4} parent=31 // pred_fallthru
        _
      // Predicated region
      $region45: #{forward.4} parent=31 // pred_check
        %p668 = pneg %p166
      $region46: #{forward.4} parent=31 // pred_check_branch
        %670 = sbr.rel (%p668) target = $region48
      $region47: #{forward.4} parent=31 // pred_region
        _
      $region48: #{forward.4} parent=31 // pred_fallthru
        _
      // Predicated region
      $region49: #{forward.4} parent=31 // pred_check
        %p671 = pneg %p145
      $region50: #{forward.4} parent=31 // pred_check_branch
        %673 = sbr.rel (%p671) target = $region52
      $region51: #{forward.4} parent=31 // pred_region
        _
      $region52: #{forward.4} parent=31 // pred_fallthru
        _
      // Predicated region
      $region53: #{forward.4} parent=31 // pred_check
        %p674 = pneg %p166
      $region54: #{forward.4} parent=31 // pred_check_branch
        %676 = sbr.rel (%p674) target = $region56
      $region55: #{forward.4} parent=31 // pred_region
        _
      $region56: #{forward.4} parent=31 // pred_fallthru
        _
    $region32: #{forward.4} parent=5 // pred_fallthru
      _
    %p677 = scmp.le.s32.totalorder 2, %s12
    // Predicated region
    $region57: #{forward.4} parent=5 // pred_check
      %p678 = pneg %p677
    $region58: #{forward.4} parent=5 // pred_check_branch
      %680 = sbr.rel (%p678) target = $region60
    $region59: #{forward.4} parent=5 // pred_region
      %s681 = ssub.s32 %s12, 2
      // Predicated region
      $region61: #{forward.4} parent=59 // pred_check
        %p682 = pneg %p130
      $region62: #{forward.4} parent=59 // pred_check_branch
        %684 = sbr.rel (%p682) target = $region64
      $region63: #{forward.4} parent=59 // pred_region
        %s685 = smul.u32 16, %s24
        %p686 = scmp.lt.s32.totalorder %s23, 3
        %s687 = scalar_select %p686, %s23, 3
        %p688 = scmp.lt.s32.totalorder %s685, 15
        %s689 = scalar_select %p688, %s685, 15
        %s690 = smul.addr %s687, 16
        %s691 = sadd.s32 %s689, %s690
        %s692 = smul.addr %s691, 8
        %s693 = scalar_lea.vmem %s3, %s692
      $region64: #{forward.4} parent=59 // pred_fallthru
        _
    $region60: #{forward.4} parent=5 // pred_fallthru
      _
  $region6: #{forward.4} parent=0 // loop_footer
    %s16 = sadd.s32 1, %s12
  $region7: #{forward.4} parent=0 // loop_footer_branch
    %11 = sbr.rel target = $region3
  $region8: #{forward.4} parent=0 // loop_exit
    _

</llo_original>
